<compile_context>
chip_gen: v7x
topology: tpu7x:2x2x1
jax: 0.10.0
libtpu: 0.0.40
codegen_flags: <defaults>
</compile_context>

<pallas_src>
import jax
import jax.numpy as jnp
from jax.experimental import pallas as pl
from jax.experimental.pallas import tpu as pltpu


_SUBCHUNK = 128    # lanes per inner step: full MXU N on v5e, ~32 live vregs peak
_LANE_TILE = 256   # grid-tile granularity (multiple of 128 for v5e, 256 for v6e/v7x)


# ---------------------------------------------------------------------------
# Kernel (feature-major: refs are  x (D, bt),  w_i (out, in),  b_i (out, 1),
# o (1, bt).  BN1..3 are pre-folded into w2/b2, w3/b3, w4/b4 by fold_params.)
# ---------------------------------------------------------------------------
def _mlp_kernel(x_ref,
                w1_ref, b1_ref,
                w2_ref, b2_ref,
                w3_ref, b3_ref,
                w4_ref, b4_ref,
                o_ref):
    n_sub = x_ref.shape[-1] // _SUBCHUNK

    def body(c, carry):
        off = pl.multiple_of(c * _SUBCHUNK, _SUBCHUNK)
        xc = x_ref[:, pl.ds(off, _SUBCHUNK)]                       # (D, sc)

        # layer1 + ReLU                            (BN1 folded into w2/b2)
        h = jnp.dot(w1_ref[...], xc,
                    preferred_element_type=jnp.float32) + b1_ref[...]
        h = jnp.maximum(h, 0.0)                                    # (128, sc)

        # layer2 + ReLU                            (BN2 folded into w3/b3)
        h = jnp.dot(w2_ref[...], h,
                    preferred_element_type=jnp.float32) + b2_ref[...]
        h = jnp.maximum(h, 0.0)                                    # (64, sc)

        # layer3 + ReLU                            (BN3 folded into w4/b4)
        h = jnp.dot(w3_ref[...], h,
                    preferred_element_type=jnp.float32) + b3_ref[...]
        h = jnp.maximum(h, 0.0)                                    # (32, sc)

        # layer4: (1,32)@(32,sc) -> lane-dense (1,sc) row, unmasked store.
        o = jnp.dot(w4_ref[...], h,
                    preferred_element_type=jnp.float32) + b4_ref[...]
        o_ref[:, pl.ds(off, _SUBCHUNK)] = o.astype(o_ref.dtype)
        return carry

    jax.lax.fori_loop(0, n_sub, body, 0, unroll=True)


# ---------------------------------------------------------------------------
# Wrapper
# ---------------------------------------------------------------------------
def _round_up(n, m):
    return (n + m - 1) // m * m


def _choose_batch_tile(B, batch_tile):
    bt = min(batch_tile, _round_up(B, _LANE_TILE))
    if B > _LANE_TILE:
        # Keep >= 2 grid steps when the batch allows it: the batch axis is
        # marked "parallel", so v7x's two TensorCores each take a share.
        bt = min(bt, max(_LANE_TILE, _round_up(B, 2 * _LANE_TILE) // 2))
    return max(_LANE_TILE, _round_up(bt, _LANE_TILE))


def _resident(arr):
    # Whole-array block, constant index_map: DMA'd once, stays VMEM-resident.
    return pl.BlockSpec(arr.shape, lambda i: (0, 0))


def rent_prediction_forward(x, fp, *, batch_tile=1024):
    """x: (B, input_dim) f32.  fp: folded, pre-transposed params (fold_params)."""
    B, D = x.shape
    bt = _choose_batch_tile(B, batch_tile)
    Bp = _round_up(B, bt)

    # Feature-major layout: one transpose copy (required anyway); the tail
    # padding fuses into the same copy under jit, so it adds no extra traffic.
    x_t = x.T
    if Bp != B:
        x_t = jnp.pad(x_t, ((0, 0), (0, Bp - B)))   # padded columns sliced off

    out_row = pl.pallas_call(
        _mlp_kernel,
        out_shape=jax.ShapeDtypeStruct((1, Bp), jnp.float32),
        grid_spec=pl.GridSpec(
            grid=(Bp // bt,),
            in_specs=[
                pl.BlockSpec((D, bt), lambda i: (0, i)),
                _resident(fp["w1"]), _resident(fp["b1"]),
                _resident(fp["w2"]), _resident(fp["b2"]),
                _resident(fp["w3"]), _resident(fp["b3"]),
                _resident(fp["w4"]), _resident(fp["b4"]),
            ],
            out_specs=pl.BlockSpec((1, bt), lambda i: (0, i)),
        ),
        compiler_params=pltpu.CompilerParams(
            dimension_semantics=("parallel",)),
    )(x_t, fp["w1"], fp["b1"], fp["w2"], fp["b2"],
      fp["w3"], fp["b3"], fp["w4"], fp["b4"])
    return out_row[0, :B].reshape(B, 1)


# ---------------------------------------------------------------------------
# Parameter construction (torch convention: W is (out_features, in_features))
# and eval-mode BN folding into the *next* layer.
# ---------------------------------------------------------------------------
def init_raw_params(key, input_dim):
    dims = [input_dim, 128, 64, 32, 1]
    keys = iter(jax.random.split(key, 32))
    p = {}
    for li, (din, dout) in enumerate(zip(dims[:-1], dims[1:]), start=1):
        p[f"w{li}"] = jax.random.normal(next(keys), (dout, din), jnp.float32) * 0.05
        p[f"b{li}"] = jax.random.normal(next(keys), (dout,), jnp.float32) * 0.05
        if li <= 3:
            p[f"gamma{li}"] = 1.0 + 0.1 * jax.random.normal(next(keys), (dout,), jnp.float32)
            p[f"beta{li}"] = 0.1 * jax.random.normal(next(keys), (dout,), jnp.float32)
            p[f"mean{li}"] = 0.1 * jax.random.normal(next(keys), (dout,), jnp.float32)
            p[f"var{li}"] = jnp.abs(1.0 + 0.1 * jax.random.normal(next(keys), (dout,), jnp.float32))
    return p


def fold_params(p, eps=1e-5):
    """Fold eval-mode BN_i (scale s, shift t) into layer_{i+1} (feature-major):
       W @ (s*h + t) + b  ==  (W * s[None,:]) @ h + (W @ t + b)."""
    s, t = {}, {}
    for i in (1, 2, 3):
        si = p[f"gamma{i}"] / jnp.sqrt(p[f"var{i}"] + eps)
        s[i] = si
        t[i] = p[f"beta{i}"] - p[f"mean{i}"] * si
    return {
        "w1": p["w1"],                                     # (128, D)
        "b1": p["b1"].reshape(-1, 1),                      # (128, 1)
        "w2": p["w2"] * s[1][None, :],                     # (64, 128)
        "b2": (p["b2"] + p["w2"] @ t[1]).reshape(-1, 1),   # (64, 1)
        "w3": p["w3"] * s[2][None, :],                     # (32, 64)
        "b3": (p["b3"] + p["w3"] @ t[2]).reshape(-1, 1),   # (32, 1)
        "w4": p["w4"] * s[3][None, :],                     # (1, 32)
        "b4": (p["b4"] + p["w4"] @ t[3]).reshape(-1, 1),   # (1, 1)
    }


# ---------------------------------------------------------------------------
# Pure-JAX reference (un-folded, explicit eval-mode BN, batch-major)
# ---------------------------------------------------------------------------
def reference_forward(x, p, eps=1e-5):
    hi = jax.lax.Precision.HIGHEST

    def bn(h, i):
        return ((h - p[f"mean{i}"]) / jnp.sqrt(p[f"var{i}"] + eps)
                * p[f"gamma{i}"] + p[f"beta{i}"])

    h = bn(jnp.maximum(jnp.dot(x, p["w1"].T, precision=hi) + p["b1"], 0.0), 1)
    h = bn(jnp.maximum(jnp.dot(h, p["w2"].T, precision=hi) + p["b2"], 0.0), 2)
    h = bn(jnp.maximum(jnp.dot(h, p["w3"].T, precision=hi) + p["b3"], 0.0), 3)
    return jnp.dot(h, p["w4"].T, precision=hi) + p["b4"]


if __name__ == "__main__":
    key = jax.random.PRNGKey(0)
    k_param, k_x1, k_x2 = jax.random.split(key, 3)

    input_dim = 16
    raw = init_raw_params(k_param, input_dim)
    fp = fold_params(raw)

    fwd = jax.jit(rent_prediction_forward)

    # Test 1: small batch -> single 256-lane tile (exercises lane padding 20->256).
    x1 = jax.random.normal(k_x1, (20, input_dim), jnp.float32)
    out1 = jax.block_until_ready(fwd(x1, fp))
    ref1 = reference_forward(x1, raw)
    assert out1.shape == (20, 1), out1.shape
    assert jnp.allclose(out1, ref1, atol=1e-4, rtol=1e-4), (
        f"mismatch: max abs err {jnp.max(jnp.abs(out1 - ref1))}")

    # Test 2: >= 2 grid steps (v7x megacore path) + ragged-tail padding (700->1024).
    x2 = jax.random.normal(k_x2, (700, input_dim), jnp.float32)
    out2 = jax.block_until_ready(fwd(x2, fp))
    ref2 = reference_forward(x2, raw)
    assert out2.shape == (700, 1), out2.shape
    assert jnp.allclose(out2, ref2, atol=1e-4, rtol=1e-4), (
        f"mismatch: max abs err {jnp.max(jnp.abs(out2 - ref2))}")

    print("KERNEL_OK")
</pallas_src>

<mosaic_0001>
module attributes {stable_mosaic.version = 11 : i64} {
  func.func @_mlp_kernel(%arg0: i32, %arg1: memref<16x256xf32, #tpu.memory_space<vmem>>, %arg2: memref<128x16xf32, #tpu.memory_space<vmem>>, %arg3: memref<128x1xf32, #tpu.memory_space<vmem>>, %arg4: memref<64x128xf32, #tpu.memory_space<vmem>>, %arg5: memref<64x1xf32, #tpu.memory_space<vmem>>, %arg6: memref<32x64xf32, #tpu.memory_space<vmem>>, %arg7: memref<32x1xf32, #tpu.memory_space<vmem>>, %arg8: memref<1x32xf32, #tpu.memory_space<vmem>>, %arg9: memref<1x1xf32, #tpu.memory_space<vmem>>, %arg10: memref<1x256xf32, #tpu.memory_space<vmem>>) attributes {dimension_semantics = [#tpu.dimension_semantics<parallel>], iteration_bounds = array<i64: 1>, scalar_prefetch = 0 : i64, scratch_operands = 0 : i64, tpu.core_type = #tpu.core_type<tc>, window_params = [{transform_indices = @transform_0, window_bounds = array<i64: 16, 256>}, {pipeline_mode = #tpu.pipeline_mode<synchronous>, transform_indices = @transform_1, window_bounds = array<i64: 128, 16>}, {pipeline_mode = #tpu.pipeline_mode<synchronous>, transform_indices = @transform_2, window_bounds = array<i64: 128, 1>}, {pipeline_mode = #tpu.pipeline_mode<synchronous>, transform_indices = @transform_3, window_bounds = array<i64: 64, 128>}, {pipeline_mode = #tpu.pipeline_mode<synchronous>, transform_indices = @transform_4, window_bounds = array<i64: 64, 1>}, {pipeline_mode = #tpu.pipeline_mode<synchronous>, transform_indices = @transform_5, window_bounds = array<i64: 32, 64>}, {pipeline_mode = #tpu.pipeline_mode<synchronous>, transform_indices = @transform_6, window_bounds = array<i64: 32, 1>}, {pipeline_mode = #tpu.pipeline_mode<synchronous>, transform_indices = @transform_7, window_bounds = array<i64: 1, 32>}, {pipeline_mode = #tpu.pipeline_mode<synchronous>, transform_indices = @transform_8, window_bounds = array<i64: 1, 1>}, {transform_indices = @transform_9, window_bounds = array<i64: 1, 256>}]} {
    %c0_i32 = arith.constant 0 : i32
    %c128_i32 = arith.constant 128 : i32
    %0 = arith.muli %c0_i32, %c128_i32 : i32
    %1 = tpu.assume_multiple %0, 128 : i32
    %c0 = arith.constant 0 : index
    %2 = arith.index_cast %1 : i32 to index
    %3 = vector.load %arg1[%c0, %2] : memref<16x256xf32, #tpu.memory_space<vmem>>, vector<16x128xf32>
    %c0_0 = arith.constant 0 : index
    %c0_1 = arith.constant 0 : index
    %4 = vector.load %arg2[%c0_0, %c0_1] : memref<128x16xf32, #tpu.memory_space<vmem>>, vector<128x16xf32>
    %cst = arith.constant dense<0.000000e+00> : vector<128x128xf32>
    %5 = tpu.matmul %4, %3, %cst {dimension_numbers = #tpu.dot_dimension_numbers<[1], [0], [0], [1], [0, 0, 1, 1], [], []>} : vector<128x16xf32>, vector<16x128xf32>, vector<128x128xf32> -> vector<128x128xf32>
    %c0_2 = arith.constant 0 : index
    %c0_3 = arith.constant 0 : index
    %6 = vector.load %arg3[%c0_2, %c0_3] : memref<128x1xf32, #tpu.memory_space<vmem>>, vector<128x1xf32>
    %7 = vector.broadcast %6 : vector<128x1xf32> to vector<128x128xf32>
    %8 = arith.addf %5, %7 : vector<128x128xf32>
    %cst_4 = arith.constant 0.000000e+00 : f32
    %9 = vector.broadcast %cst_4 : f32 to vector<128x128xf32>
    %10 = arith.maximumf %8, %9 : vector<128x128xf32>
    %c0_5 = arith.constant 0 : index
    %c0_6 = arith.constant 0 : index
    %11 = vector.load %arg4[%c0_5, %c0_6] : memref<64x128xf32, #tpu.memory_space<vmem>>, vector<64x128xf32>
    %cst_7 = arith.constant dense<0.000000e+00> : vector<64x128xf32>
    %12 = tpu.matmul %11, %10, %cst_7 {dimension_numbers = #tpu.dot_dimension_numbers<[1], [0], [0], [1], [0, 0, 1, 1], [], []>} : vector<64x128xf32>, vector<128x128xf32>, vector<64x128xf32> -> vector<64x128xf32>
    %c0_8 = arith.constant 0 : index
    %c0_9 = arith.constant 0 : index
    %13 = vector.load %arg5[%c0_8, %c0_9] : memref<64x1xf32, #tpu.memory_space<vmem>>, vector<64x1xf32>
    %14 = vector.broadcast %13 : vector<64x1xf32> to vector<64x128xf32>
    %15 = arith.addf %12, %14 : vector<64x128xf32>
    %cst_10 = arith.constant 0.000000e+00 : f32
    %16 = vector.broadcast %cst_10 : f32 to vector<64x128xf32>
    %17 = arith.maximumf %15, %16 : vector<64x128xf32>
    %c0_11 = arith.constant 0 : index
    %c0_12 = arith.constant 0 : index
    %18 = vector.load %arg6[%c0_11, %c0_12] : memref<32x64xf32, #tpu.memory_space<vmem>>, vector<32x64xf32>
    %cst_13 = arith.constant dense<0.000000e+00> : vector<32x128xf32>
    %19 = tpu.matmul %18, %17, %cst_13 {dimension_numbers = #tpu.dot_dimension_numbers<[1], [0], [0], [1], [0, 0, 1, 1], [], []>} : vector<32x64xf32>, vector<64x128xf32>, vector<32x128xf32> -> vector<32x128xf32>
    %c0_14 = arith.constant 0 : index
    %c0_15 = arith.constant 0 : index
    %20 = vector.load %arg7[%c0_14, %c0_15] : memref<32x1xf32, #tpu.memory_space<vmem>>, vector<32x1xf32>
    %21 = vector.broadcast %20 : vector<32x1xf32> to vector<32x128xf32>
    %22 = arith.addf %19, %21 : vector<32x128xf32>
    %cst_16 = arith.constant 0.000000e+00 : f32
    %23 = vector.broadcast %cst_16 : f32 to vector<32x128xf32>
    %24 = arith.maximumf %22, %23 : vector<32x128xf32>
    %c0_17 = arith.constant 0 : index
    %c0_18 = arith.constant 0 : index
    %25 = vector.load %arg8[%c0_17, %c0_18] : memref<1x32xf32, #tpu.memory_space<vmem>>, vector<1x32xf32>
    %cst_19 = arith.constant dense<0.000000e+00> : vector<1x128xf32>
    %26 = tpu.matmul %25, %24, %cst_19 {dimension_numbers = #tpu.dot_dimension_numbers<[1], [0], [0], [1], [0, 0, 1, 1], [], []>} : vector<1x32xf32>, vector<32x128xf32>, vector<1x128xf32> -> vector<1x128xf32>
    %c0_20 = arith.constant 0 : index
    %c0_21 = arith.constant 0 : index
    %27 = vector.load %arg9[%c0_20, %c0_21] : memref<1x1xf32, #tpu.memory_space<vmem>>, vector<1x1xf32>
    %28 = vector.broadcast %27 : vector<1x1xf32> to vector<1x128xf32>
    %29 = arith.addf %26, %28 : vector<1x128xf32>
    %c0_22 = arith.constant 0 : index
    %30 = arith.index_cast %1 : i32 to index
    %31 = vector.load %arg10[%c0_22, %30] : memref<1x256xf32, #tpu.memory_space<vmem>>, vector<1x128xf32>
    tpu.vector_store %arg10[%c0_22, %30], %29 {strides = array<i32>} : memref<1x256xf32, #tpu.memory_space<vmem>>, vector<1x128xf32>,
    %c1_i32 = arith.constant 1 : i32
    %c128_i32_23 = arith.constant 128 : i32
    %32 = arith.muli %c1_i32, %c128_i32_23 : i32
    %33 = tpu.assume_multiple %32, 128 : i32
    %c0_24 = arith.constant 0 : index
    %34 = arith.index_cast %33 : i32 to index
    %35 = vector.load %arg1[%c0_24, %34] : memref<16x256xf32, #tpu.memory_space<vmem>>, vector<16x128xf32>
    %c0_25 = arith.constant 0 : index
    %c0_26 = arith.constant 0 : index
    %36 = vector.load %arg2[%c0_25, %c0_26] : memref<128x16xf32, #tpu.memory_space<vmem>>, vector<128x16xf32>
    %cst_27 = arith.constant dense<0.000000e+00> : vector<128x128xf32>
    %37 = tpu.matmul %36, %35, %cst_27 {dimension_numbers = #tpu.dot_dimension_numbers<[1], [0], [0], [1], [0, 0, 1, 1], [], []>} : vector<128x16xf32>, vector<16x128xf32>, vector<128x128xf32> -> vector<128x128xf32>
    %c0_28 = arith.constant 0 : index
    %c0_29 = arith.constant 0 : index
    %38 = vector.load %arg3[%c0_28, %c0_29] : memref<128x1xf32, #tpu.memory_space<vmem>>, vector<128x1xf32>
    %39 = vector.broadcast %38 : vector<128x1xf32> to vector<128x128xf32>
    %40 = arith.addf %37, %39 : vector<128x128xf32>
    %cst_30 = arith.constant 0.000000e+00 : f32
    %41 = vector.broadcast %cst_30 : f32 to vector<128x128xf32>
    %42 = arith.maximumf %40, %41 : vector<128x128xf32>
    %c0_31 = arith.constant 0 : index
    %c0_32 = arith.constant 0 : index
    %43 = vector.load %arg4[%c0_31, %c0_32] : memref<64x128xf32, #tpu.memory_space<vmem>>, vector<64x128xf32>
    %cst_33 = arith.constant dense<0.000000e+00> : vector<64x128xf32>
    %44 = tpu.matmul %43, %42, %cst_33 {dimension_numbers = #tpu.dot_dimension_numbers<[1], [0], [0], [1], [0, 0, 1, 1], [], []>} : vector<64x128xf32>, vector<128x128xf32>, vector<64x128xf32> -> vector<64x128xf32>
    %c0_34 = arith.constant 0 : index
    %c0_35 = arith.constant 0 : index
    %45 = vector.load %arg5[%c0_34, %c0_35] : memref<64x1xf32, #tpu.memory_space<vmem>>, vector<64x1xf32>
    %46 = vector.broadcast %45 : vector<64x1xf32> to vector<64x128xf32>
    %47 = arith.addf %44, %46 : vector<64x128xf32>
    %cst_36 = arith.constant 0.000000e+00 : f32
    %48 = vector.broadcast %cst_36 : f32 to vector<64x128xf32>
    %49 = arith.maximumf %47, %48 : vector<64x128xf32>
    %c0_37 = arith.constant 0 : index
    %c0_38 = arith.constant 0 : index
    %50 = vector.load %arg6[%c0_37, %c0_38] : memref<32x64xf32, #tpu.memory_space<vmem>>, vector<32x64xf32>
    %cst_39 = arith.constant dense<0.000000e+00> : vector<32x128xf32>
    %51 = tpu.matmul %50, %49, %cst_39 {dimension_numbers = #tpu.dot_dimension_numbers<[1], [0], [0], [1], [0, 0, 1, 1], [], []>} : vector<32x64xf32>, vector<64x128xf32>, vector<32x128xf32> -> vector<32x128xf32>
    %c0_40 = arith.constant 0 : index
    %c0_41 = arith.constant 0 : index
    %52 = vector.load %arg7[%c0_40, %c0_41] : memref<32x1xf32, #tpu.memory_space<vmem>>, vector<32x1xf32>
    %53 = vector.broadcast %52 : vector<32x1xf32> to vector<32x128xf32>
    %54 = arith.addf %51, %53 : vector<32x128xf32>
    %cst_42 = arith.constant 0.000000e+00 : f32
    %55 = vector.broadcast %cst_42 : f32 to vector<32x128xf32>
    %56 = arith.maximumf %54, %55 : vector<32x128xf32>
    %c0_43 = arith.constant 0 : index
    %c0_44 = arith.constant 0 : index
    %57 = vector.load %arg8[%c0_43, %c0_44] : memref<1x32xf32, #tpu.memory_space<vmem>>, vector<1x32xf32>
    %cst_45 = arith.constant dense<0.000000e+00> : vector<1x128xf32>
    %58 = tpu.matmul %57, %56, %cst_45 {dimension_numbers = #tpu.dot_dimension_numbers<[1], [0], [0], [1], [0, 0, 1, 1], [], []>} : vector<1x32xf32>, vector<32x128xf32>, vector<1x128xf32> -> vector<1x128xf32>
    %c0_46 = arith.constant 0 : index
    %c0_47 = arith.constant 0 : index
    %59 = vector.load %arg9[%c0_46, %c0_47] : memref<1x1xf32, #tpu.memory_space<vmem>>, vector<1x1xf32>
    %60 = vector.broadcast %59 : vector<1x1xf32> to vector<1x128xf32>
    %61 = arith.addf %58, %60 : vector<1x128xf32>
    %c0_48 = arith.constant 0 : index
    %62 = arith.index_cast %33 : i32 to index
    %63 = vector.load %arg10[%c0_48, %62] : memref<1x256xf32, #tpu.memory_space<vmem>>, vector<1x128xf32>
    tpu.vector_store %arg10[%c0_48, %62], %61 {strides = array<i32>} : memref<1x256xf32, #tpu.memory_space<vmem>>, vector<1x128xf32>,
    %c2_i32 = arith.constant 2 : i32
    return
  }
  func.func @transform_0(%arg0: i32) -> (i32, i32) {
    %c0_i32 = arith.constant 0 : i32
    %c0_i32_0 = arith.constant 0 : i32
    return %c0_i32, %arg0 : i32, i32
  }
  func.func @transform_1(%arg0: i32) -> (i32, i32) {
    %c0_i32 = arith.constant 0 : i32
    %c0_i32_0 = arith.constant 0 : i32
    %c0_i32_1 = arith.constant 0 : i32
    return %c0_i32, %c0_i32_0 : i32, i32
  }
  func.func @transform_2(%arg0: i32) -> (i32, i32) {
    %c0_i32 = arith.constant 0 : i32
    %c0_i32_0 = arith.constant 0 : i32
    %c0_i32_1 = arith.constant 0 : i32
    return %c0_i32, %c0_i32_0 : i32, i32
  }
  func.func @transform_3(%arg0: i32) -> (i32, i32) {
    %c0_i32 = arith.constant 0 : i32
    %c0_i32_0 = arith.constant 0 : i32
    %c0_i32_1 = arith.constant 0 : i32
    return %c0_i32, %c0_i32_0 : i32, i32
  }
  func.func @transform_4(%arg0: i32) -> (i32, i32) {
    %c0_i32 = arith.constant 0 : i32
    %c0_i32_0 = arith.constant 0 : i32
    %c0_i32_1 = arith.constant 0 : i32
    return %c0_i32, %c0_i32_0 : i32, i32
  }
  func.func @transform_5(%arg0: i32) -> (i32, i32) {
    %c0_i32 = arith.constant 0 : i32
    %c0_i32_0 = arith.constant 0 : i32
    %c0_i32_1 = arith.constant 0 : i32
    return %c0_i32, %c0_i32_0 : i32, i32
  }
  func.func @transform_6(%arg0: i32) -> (i32, i32) {
    %c0_i32 = arith.constant 0 : i32
    %c0_i32_0 = arith.constant 0 : i32
    %c0_i32_1 = arith.constant 0 : i32
    return %c0_i32, %c0_i32_0 : i32, i32
  }
  func.func @transform_7(%arg0: i32) -> (i32, i32) {
    %c0_i32 = arith.constant 0 : i32
    %c0_i32_0 = arith.constant 0 : i32
    %c0_i32_1 = arith.constant 0 : i32
    return %c0_i32, %c0_i32_0 : i32, i32
  }
  func.func @transform_8(%arg0: i32) -> (i32, i32) {
    %c0_i32 = arith.constant 0 : i32
    %c0_i32_0 = arith.constant 0 : i32
    %c0_i32_1 = arith.constant 0 : i32
    return %c0_i32, %c0_i32_0 : i32, i32
  }
  func.func @transform_9(%arg0: i32) -> (i32, i32) {
    %c0_i32 = arith.constant 0 : i32
    %c0_i32_0 = arith.constant 0 : i32
    return %c0_i32, %arg0 : i32, i32
  }
}

</mosaic_0001>

<llo_original>
// kernel: rent_prediction_forward.1
$region0: #{rent_prediction_forward.1}
  #allocation0 [shape = 'u32[]', space=smem, size = 0x4, offset = 0x4, fixed_abs, tag = 'smem constant byte address 0x4 - core index']
  #allocation1 [shape = 'u32[144,128]{1,0:T(1,128)}', space=vmem, size = 0x12000, scoped, tag = 'internal scratch']
  #allocation2 [shape = 'f32[1,1]{1,0:T(1,128)S(1)}', space=vmem, size = 0x200, scoped, tag = 'scoped memory for rent_prediction_forward.1']
  %s0 = inlined_call_operand.vmem [shape: f32[16,256], index: 0, kind: input, shape index: {}]
  %s1 = inlined_call_operand.vmem [shape: f32[128,16], index: 1, kind: input, shape index: {}]
  %s2 = inlined_call_operand.vmem [shape: f32[128,1], index: 2, kind: input, shape index: {}]
  %s3 = inlined_call_operand.vmem [shape: f32[64,128], index: 3, kind: input, shape index: {}]
  %s4 = inlined_call_operand.vmem [shape: f32[64,1], index: 4, kind: input, shape index: {}]
  %s5 = inlined_call_operand.vmem [shape: f32[32,64], index: 5, kind: input, shape index: {}]
  %s6 = inlined_call_operand.vmem [shape: f32[32,1], index: 6, kind: input, shape index: {}]
  %s7 = inlined_call_operand.vmem [shape: f32[1,32], index: 7, kind: input, shape index: {}]
  %s8 = inlined_call_operand.<no memory space> [shape: f32[1,1], index: 8, kind: input, shape index: {}]
  %s9 = inlined_call_operand.vmem [shape: f32[1,256], index: 9, kind: output, shape index: {}]
  %s10 = sld [smem:[#allocation0]]
  $region46: #{rent_prediction_forward.1} parent=0
    _
  %s12 = ssub.s32 1, %s10
  %s13 = scalar_select 0, %s12, %s10
  %v14 = vstv %s8
  %15 = vst [vmem:[#allocation2] sm:$0x1] %v14
  // Predicated region
  $region2: #{rent_prediction_forward.1} parent=0 // pred_check
    _
  $region3: #{rent_prediction_forward.1} parent=0 // pred_check_branch
    %17 = sbr.rel (0) target = $region5
  $region4: #{rent_prediction_forward.1} parent=0 // pred_region
    _
  $region5: #{rent_prediction_forward.1} parent=0 // pred_fallthru
    _
  // Predicated region
  $region6: #{rent_prediction_forward.1} parent=0 // pred_check
    _
  $region7: #{rent_prediction_forward.1} parent=0 // pred_check_branch
    %19 = sbr.rel (0) target = $region9
  $region8: #{rent_prediction_forward.1} parent=0 // pred_region
    _
  $region9: #{rent_prediction_forward.1} parent=0 // pred_fallthru
    _
  // Predicated region
  $region10: #{rent_prediction_forward.1} parent=0 // pred_check
    _
  $region11: #{rent_prediction_forward.1} parent=0 // pred_check_branch
    %21 = sbr.rel (0) target = $region13
  $region12: #{rent_prediction_forward.1} parent=0 // pred_region
    _
  $region13: #{rent_prediction_forward.1} parent=0 // pred_fallthru
    _
  // Predicated region
  $region14: #{rent_prediction_forward.1} parent=0 // pred_check
    _
  $region15: #{rent_prediction_forward.1} parent=0 // pred_check_branch
    %23 = sbr.rel (0) target = $region17
  $region16: #{rent_prediction_forward.1} parent=0 // pred_region
    _
  $region17: #{rent_prediction_forward.1} parent=0 // pred_fallthru
    _
  // Predicated region
  $region18: #{rent_prediction_forward.1} parent=0 // pred_check
    _
  $region19: #{rent_prediction_forward.1} parent=0 // pred_check_branch
    %25 = sbr.rel (0) target = $region21
  $region20: #{rent_prediction_forward.1} parent=0 // pred_region
    _
  $region21: #{rent_prediction_forward.1} parent=0 // pred_fallthru
    _
  // Predicated region
  $region22: #{rent_prediction_forward.1} parent=0 // pred_check
    _
  $region23: #{rent_prediction_forward.1} parent=0 // pred_check_branch
    %27 = sbr.rel (0) target = $region25
  $region24: #{rent_prediction_forward.1} parent=0 // pred_region
    _
  $region25: #{rent_prediction_forward.1} parent=0 // pred_fallthru
    _
  // Predicated region
  $region26: #{rent_prediction_forward.1} parent=0 // pred_check
    _
  $region27: #{rent_prediction_forward.1} parent=0 // pred_check_branch
    %29 = sbr.rel (0) target = $region29
  $region28: #{rent_prediction_forward.1} parent=0 // pred_region
    _
  $region29: #{rent_prediction_forward.1} parent=0 // pred_fallthru
    _
  // Predicated region
  $region30: #{rent_prediction_forward.1} parent=0 // pred_check
    _
  $region31: #{rent_prediction_forward.1} parent=0 // pred_check_branch
    %31 = sbr.rel (0) target = $region33
  $region32: #{rent_prediction_forward.1} parent=0 // pred_region
    _
  $region33: #{rent_prediction_forward.1} parent=0 // pred_fallthru
    _
  // Predicated region
  $region34: #{rent_prediction_forward.1} parent=0 // pred_check
    _
  $region35: #{rent_prediction_forward.1} parent=0 // pred_check_branch
    %33 = sbr.rel (0) target = $region37
  $region36: #{rent_prediction_forward.1} parent=0 // pred_region
    _
  $region37: #{rent_prediction_forward.1} parent=0 // pred_fallthru
    _
  %v34 = vld [vmem:[%s0] sm:$0xff]
  %v35 = vld [vmem:[%s0 + $0x10] sm:$0xff]
  %v36 = vld [vmem:[%s1] sm:$0xff]
  %v37 = vld [vmem:[%s1 + $0x8] sm:$0xff]
  %v38 = vld [vmem:[%s1 + $0x10] sm:$0xff]
  %v39 = vld [vmem:[%s1 + $0x18] sm:$0xff]
  %v40 = vld [vmem:[%s1 + $0x20] sm:$0xff]
  %v41 = vld [vmem:[%s1 + $0x28] sm:$0xff]
  %v42 = vld [vmem:[%s1 + $0x30] sm:$0xff]
  %v43 = vld [vmem:[%s1 + $0x38] sm:$0xff]
  %v44 = vld [vmem:[%s1 + $0x40] sm:$0xff]
  %v45 = vld [vmem:[%s1 + $0x48] sm:$0xff]
  %v46 = vld [vmem:[%s1 + $0x50] sm:$0xff]
  %v47 = vld [vmem:[%s1 + $0x58] sm:$0xff]
  %v48 = vld [vmem:[%s1 + $0x60] sm:$0xff]
  %v49 = vld [vmem:[%s1 + $0x68] sm:$0xff]
  %v50 = vld [vmem:[%s1 + $0x70] sm:$0xff]
  %v51 = vld [vmem:[%s1 + $0x78] sm:$0xff]
  %v52 = vld [vmem:[%s2] sm:$0xff]
  %v53 = vld [vmem:[%s2 + $0x8] sm:$0xff]
  %v54 = vld [vmem:[%s2 + $0x10] sm:$0xff]
  %v55 = vld [vmem:[%s2 + $0x18] sm:$0xff]
  %v56 = vld [vmem:[%s2 + $0x20] sm:$0xff]
  %v57 = vld [vmem:[%s2 + $0x28] sm:$0xff]
  %v58 = vld [vmem:[%s2 + $0x30] sm:$0xff]
  %v59 = vld [vmem:[%s2 + $0x38] sm:$0xff]
  %v60 = vld [vmem:[%s2 + $0x40] sm:$0xff]
  %v61 = vld [vmem:[%s2 + $0x48] sm:$0xff]
  %v62 = vld [vmem:[%s2 + $0x50] sm:$0xff]
  %v63 = vld [vmem:[%s2 + $0x58] sm:$0xff]
  %v64 = vld [vmem:[%s2 + $0x60] sm:$0xff]
  %v65 = vld [vmem:[%s2 + $0x68] sm:$0xff]
  %v66 = vld [vmem:[%s2 + $0x70] sm:$0xff]
  %v67 = vld [vmem:[%s2 + $0x78] sm:$0xff]
  %69 = vset.pattern.permute.xlu0 0
  %70 = vperm.xlu0 %69, %v52
  %v71 = vpop.permute.xlu0 %70
  %74 = vset.pattern.permute.xlu0 0
  %75 = vperm.xlu0 %74, %v53
  %v76 = vpop.permute.xlu0 %75
  %79 = vset.pattern.permute.xlu0 0
  %80 = vperm.xlu0 %79, %v54
  %v81 = vpop.permute.xlu0 %80
  %84 = vset.pattern.permute.xlu0 0
  %85 = vperm.xlu0 %84, %v55
  %v86 = vpop.permute.xlu0 %85
  %89 = vset.pattern.permute.xlu0 0
  %90 = vperm.xlu0 %89, %v56
  %v91 = vpop.permute.xlu0 %90
  %94 = vset.pattern.permute.xlu0 0
  %95 = vperm.xlu0 %94, %v57
  %v96 = vpop.permute.xlu0 %95
  %99 = vset.pattern.permute.xlu0 0
  %100 = vperm.xlu0 %99, %v58
  %v101 = vpop.permute.xlu0 %100
  %104 = vset.pattern.permute.xlu0 0
  %105 = vperm.xlu0 %104, %v59
  %v106 = vpop.permute.xlu0 %105
  %109 = vset.pattern.permute.xlu0 0
  %110 = vperm.xlu0 %109, %v60
  %v111 = vpop.permute.xlu0 %110
  %114 = vset.pattern.permute.xlu0 0
  %115 = vperm.xlu0 %114, %v61
  %v116 = vpop.permute.xlu0 %115
  %119 = vset.pattern.permute.xlu0 0
  %120 = vperm.xlu0 %119, %v62
  %v121 = vpop.permute.xlu0 %120
  %124 = vset.pattern.permute.xlu0 0
  %125 = vperm.xlu0 %124, %v63
  %v126 = vpop.permute.xlu0 %125
  %129 = vset.pattern.permute.xlu0 0
  %130 = vperm.xlu0 %129, %v64
  %v131 = vpop.permute.xlu0 %130
  %134 = vset.pattern.permute.xlu0 0
  %135 = vperm.xlu0 %134, %v65
  %v136 = vpop.permute.xlu0 %135
  %139 = vset.pattern.permute.xlu0 0
  %140 = vperm.xlu0 %139, %v66
  %v141 = vpop.permute.xlu0 %140
  %144 = vset.pattern.permute.xlu0 0
  %145 = vperm.xlu0 %144, %v67
  %v146 = vpop.permute.xlu0 %145
  %vm148 = vcmask 130048
  %v150 = vsel %vm148, %v36, 0
  %v153 = vsel %vm148, %v37, 0
  %v156 = vsel %vm148, %v38, 0
  %v159 = vsel %vm148, %v39, 0
  %v162 = vsel %vm148, %v40, 0
  %v165 = vsel %vm148, %v41, 0
  %v168 = vsel %vm148, %v42, 0
  %v171 = vsel %vm148, %v43, 0
  %v174 = vsel %vm148, %v44, 0
  %v177 = vsel %vm148, %v45, 0
  %v180 = vsel %vm148, %v46, 0
  %v183 = vsel %vm148, %v47, 0
  %v186 = vsel %vm148, %v48, 0
  %v189 = vsel %vm148, %v49, 0
  %v192 = vsel %vm148, %v50, 0
  %v195 = vsel %vm148, %v51, 0
  %197 = vmatprep.subr.mxu0 0.0
  %198 = vmatpush1.msra.mxu0 %v34
  %199 = vmatprep.subr.mxu0 0.0
  %200 = vmatpush1.msra.mxu0 %v35
  %201 = vmatprep.subr.mxu0 0.0
  %202 = vmatpush1.msra.mxu0 0.0
  %203 = vmatprep.subr.mxu0 0.0
  %204 = vmatpush1.msra.mxu0 0.0
  %205 = vmatprep.subr.mxu0 0.0
  %206 = vmatpush1.msra.mxu0 0.0
  %207 = vmatprep.subr.mxu0 0.0
  %208 = vmatpush1.msra.mxu0 0.0
  %209 = vmatprep.subr.mxu0 0.0
  %210 = vmatpush1.msra.mxu0 0.0
  %211 = vmatprep.subr.mxu0 0.0
  %212 = vmatpush1.msra.mxu0 0.0
  %213 = vmatprep.subr.mxu0 0.0
  %214 = vmatpush1.msra.mxu0 0.0
  %215 = vmatprep.subr.mxu0 0.0
  %216 = vmatpush1.msra.mxu0 0.0
  %217 = vmatprep.subr.mxu0 0.0
  %218 = vmatpush1.msra.mxu0 0.0
  %219 = vmatprep.subr.mxu0 0.0
  %220 = vmatpush1.msra.mxu0 0.0
  %221 = vmatprep.subr.mxu0 0.0
  %222 = vmatpush1.msra.mxu0 0.0
  %223 = vmatprep.subr.mxu0 0.0
  %224 = vmatpush1.msra.mxu0 0.0
  %225 = vmatprep.subr.mxu0 0.0
  %226 = vmatpush1.msra.mxu0 0.0
  %227 = vmatprep.subr.mxu0 0.0
  %228 = vmatpush1.msra.mxu0 0.0
  %229 = vmatprep.subr.mxu0 0.0
  %230 = vmatpush1.msra.mxu0 0.0
  %231 = vmatprep.subr.mxu0 0.0
  %232 = vmatpush1.msra.mxu0 0.0
  %233 = vmatprep.subr.mxu0 0.0
  %234 = vmatpush1.msra.mxu0 0.0
  %235 = vmatprep.subr.mxu0 0.0
  %236 = vmatpush1.msra.mxu0 0.0
  %237 = vmatprep.subr.mxu0 0.0
  %238 = vmatpush1.msra.mxu0 0.0
  %239 = vmatprep.subr.mxu0 0.0
  %240 = vmatpush1.msra.mxu0 0.0
  %241 = vmatprep.subr.mxu0 0.0
  %242 = vmatpush1.msra.mxu0 0.0
  %243 = vmatprep.subr.mxu0 0.0
  %244 = vmatpush1.msra.mxu0 0.0
  %245 = vmatprep.subr.mxu0 0.0
  %246 = vmatpush1.msra.mxu0 0.0
  %247 = vmatprep.subr.mxu0 0.0
  %248 = vmatpush1.msra.mxu0 0.0
  %249 = vmatprep.subr.mxu0 0.0
  %250 = vmatpush1.msra.mxu0 0.0
  %251 = vmatprep.subr.mxu0 0.0
  %252 = vmatpush1.msra.mxu0 0.0
  %253 = vmatprep.subr.mxu0 0.0
  %254 = vmatpush1.msra.mxu0 0.0
  %255 = vmatprep.subr.mxu0 0.0
  %256 = vmatpush1.msra.mxu0 0.0
  %257 = vmatprep.subr.mxu0 0.0
  %258 = vmatpush1.msra.mxu0 0.0
  %259 = vmatprep.subr.mxu0 0.0
  %260 = vmatpush1.msra.mxu0 0.0
  %261 = vmatprep.mubr.f32.mxu0 0.0
  %262 = vmatmul.mubr.f32.gmra.mrb[0].mxu0 %v150
  %v263 = vpop.f32.mrb[0].mxu0
  %v264 = vadd.f32 %v71, %v263
  %v265 = vpop.f32.mrb[0].mxu0
  %266 = vmatprep.mubr.f32.mxu0 0.0
  %267 = vmatmul.mubr.f32.gmra.mrb[0].mxu0 %v153
  %v268 = vpop.f32.mrb[0].mxu0
  %v269 = vadd.f32 %v76, %v268
  %v270 = vpop.f32.mrb[0].mxu0
  %271 = vmatprep.mubr.f32.mxu0 0.0
  %272 = vmatmul.mubr.f32.gmra.mrb[0].mxu0 %v156
  %v273 = vpop.f32.mrb[0].mxu0
  %v274 = vadd.f32 %v81, %v273
  %v275 = vpop.f32.mrb[0].mxu0
  %276 = vmatprep.mubr.f32.mxu0 0.0
  %277 = vmatmul.mubr.f32.gmra.mrb[0].mxu0 %v159
  %v278 = vpop.f32.mrb[0].mxu0
  %v279 = vadd.f32 %v86, %v278
  %v280 = vpop.f32.mrb[0].mxu0
  %281 = vmatprep.mubr.f32.mxu0 0.0
  %282 = vmatmul.mubr.f32.gmra.mrb[0].mxu0 %v162
  %v283 = vpop.f32.mrb[0].mxu0
  %v284 = vadd.f32 %v91, %v283
  %v285 = vpop.f32.mrb[0].mxu0
  %286 = vmatprep.mubr.f32.mxu0 0.0
  %287 = vmatmul.mubr.f32.gmra.mrb[0].mxu0 %v165
  %v288 = vpop.f32.mrb[0].mxu0
  %v289 = vadd.f32 %v96, %v288
  %v290 = vpop.f32.mrb[0].mxu0
  %291 = vmatprep.mubr.f32.mxu0 0.0
  %292 = vmatmul.mubr.f32.gmra.mrb[0].mxu0 %v168
  %v293 = vpop.f32.mrb[0].mxu0
  %v294 = vadd.f32 %v101, %v293
  %v295 = vpop.f32.mrb[0].mxu0
  %296 = vmatprep.mubr.f32.mxu0 0.0
  %297 = vmatmul.mubr.f32.gmra.mrb[0].mxu0 %v171
  %v298 = vpop.f32.mrb[0].mxu0
  %v299 = vadd.f32 %v106, %v298
  %v300 = vpop.f32.mrb[0].mxu0
  %301 = vmatprep.mubr.f32.mxu0 0.0
  %302 = vmatmul.mubr.f32.gmra.mrb[0].mxu0 %v174
  %v303 = vpop.f32.mrb[0].mxu0
  %v304 = vadd.f32 %v111, %v303
  %v305 = vpop.f32.mrb[0].mxu0
  %306 = vmatprep.mubr.f32.mxu0 0.0
  %307 = vmatmul.mubr.f32.gmra.mrb[0].mxu0 %v177
  %v308 = vpop.f32.mrb[0].mxu0
  %v309 = vadd.f32 %v116, %v308
  %v310 = vpop.f32.mrb[0].mxu0
  %311 = vmatprep.mubr.f32.mxu0 0.0
  %312 = vmatmul.mubr.f32.gmra.mrb[0].mxu0 %v180
  %v313 = vpop.f32.mrb[0].mxu0
  %v314 = vadd.f32 %v121, %v313
  %v315 = vpop.f32.mrb[0].mxu0
  %316 = vmatprep.mubr.f32.mxu0 0.0
  %317 = vmatmul.mubr.f32.gmra.mrb[0].mxu0 %v183
  %v318 = vpop.f32.mrb[0].mxu0
  %v319 = vadd.f32 %v126, %v318
  %v320 = vpop.f32.mrb[0].mxu0
  %321 = vmatprep.mubr.f32.mxu0 0.0
  %322 = vmatmul.mubr.f32.gmra.mrb[0].mxu0 %v186
  %v323 = vpop.f32.mrb[0].mxu0
  %v324 = vadd.f32 %v131, %v323
  %v325 = vpop.f32.mrb[0].mxu0
  %326 = vmatprep.mubr.f32.mxu0 0.0
  %327 = vmatmul.mubr.f32.gmra.mrb[0].mxu0 %v189
  %v328 = vpop.f32.mrb[0].mxu0
  %v329 = vadd.f32 %v136, %v328
  %v330 = vpop.f32.mrb[0].mxu0
  %331 = vmatprep.mubr.f32.mxu0 0.0
  %332 = vmatmul.mubr.f32.gmra.mrb[0].mxu0 %v192
  %v333 = vpop.f32.mrb[0].mxu0
  %v334 = vadd.f32 %v141, %v333
  %v335 = vpop.f32.mrb[0].mxu0
  %336 = vmatprep.mubr.f32.mxu0 0.0
  %337 = vmatmul.mubr.f32.gmra.mrb[0].mxu0 %v195
  %v338 = vpop.f32.mrb[0].mxu0
  %v339 = vadd.f32 %v146, %v338
  %v340 = vpop.f32.mrb[0].mxu0
  %341 = vdwg.mxu0
  %v342 = vmax.f32 %v264, 0.0
  %v343 = vmax.f32 %v269, 0.0
  %v344 = vmax.f32 %v274, 0.0
  %v345 = vmax.f32 %v279, 0.0
  %v346 = vmax.f32 %v284, 0.0
  %v347 = vmax.f32 %v289, 0.0
  %v348 = vmax.f32 %v294, 0.0
  %v349 = vmax.f32 %v299, 0.0
  %v350 = vmax.f32 %v304, 0.0
  %v351 = vmax.f32 %v309, 0.0
  %v352 = vmax.f32 %v314, 0.0
  %v353 = vmax.f32 %v319, 0.0
  %v354 = vmax.f32 %v324, 0.0
  %v355 = vmax.f32 %v329, 0.0
  %v356 = vmax.f32 %v334, 0.0
  %v357 = vmax.f32 %v339, 0.0
  %v358 = vld [vmem:[%s3] sm:$0xff]
  %v359 = vld [vmem:[%s3 + $0x8] sm:$0xff]
  %v360 = vld [vmem:[%s3 + $0x10] sm:$0xff]
  %v361 = vld [vmem:[%s3 + $0x18] sm:$0xff]
  %v362 = vld [vmem:[%s3 + $0x20] sm:$0xff]
  %v363 = vld [vmem:[%s3 + $0x28] sm:$0xff]
  %v364 = vld [vmem:[%s3 + $0x30] sm:$0xff]
  %v365 = vld [vmem:[%s3 + $0x38] sm:$0xff]
  %v366 = vld [vmem:[%s4] sm:$0xff]
  %v367 = vld [vmem:[%s4 + $0x8] sm:$0xff]
  %v368 = vld [vmem:[%s4 + $0x10] sm:$0xff]
  %v369 = vld [vmem:[%s4 + $0x18] sm:$0xff]
  %v370 = vld [vmem:[%s4 + $0x20] sm:$0xff]
  %v371 = vld [vmem:[%s4 + $0x28] sm:$0xff]
  %v372 = vld [vmem:[%s4 + $0x30] sm:$0xff]
  %v373 = vld [vmem:[%s4 + $0x38] sm:$0xff]
  %375 = vset.pattern.permute.xlu0 0
  %376 = vperm.xlu0 %375, %v366
  %v377 = vpop.permute.xlu0 %376
  %380 = vset.pattern.permute.xlu0 0
  %381 = vperm.xlu0 %380, %v367
  %v382 = vpop.permute.xlu0 %381
  %385 = vset.pattern.permute.xlu0 0
  %386 = vperm.xlu0 %385, %v368
  %v387 = vpop.permute.xlu0 %386
  %390 = vset.pattern.permute.xlu0 0
  %391 = vperm.xlu0 %390, %v369
  %v392 = vpop.permute.xlu0 %391
  %395 = vset.pattern.permute.xlu0 0
  %396 = vperm.xlu0 %395, %v370
  %v397 = vpop.permute.xlu0 %396
  %400 = vset.pattern.permute.xlu0 0
  %401 = vperm.xlu0 %400, %v371
  %v402 = vpop.permute.xlu0 %401
  %405 = vset.pattern.permute.xlu0 0
  %406 = vperm.xlu0 %405, %v372
  %v407 = vpop.permute.xlu0 %406
  %410 = vset.pattern.permute.xlu0 0
  %411 = vperm.xlu0 %410, %v373
  %v412 = vpop.permute.xlu0 %411
  %414 = vmatprep.subr.mxu0 0.0
  %415 = vmatpush1.msra.mxu0 %v342
  %416 = vmatprep.subr.mxu0 0.0
  %417 = vmatpush1.msra.mxu0 %v343
  %418 = vmatprep.subr.mxu0 0.0
  %419 = vmatpush1.msra.mxu0 %v344
  %420 = vmatprep.subr.mxu0 0.0
  %421 = vmatpush1.msra.mxu0 %v345
  %422 = vmatprep.subr.mxu0 0.0
  %423 = vmatpush1.msra.mxu0 %v346
  %424 = vmatprep.subr.mxu0 0.0
  %425 = vmatpush1.msra.mxu0 %v347
  %426 = vmatprep.subr.mxu0 0.0
  %427 = vmatpush1.msra.mxu0 %v348
  %428 = vmatprep.subr.mxu0 0.0
  %429 = vmatpush1.msra.mxu0 %v349
  %430 = vmatprep.subr.mxu0 0.0
  %431 = vmatpush1.msra.mxu0 %v350
  %432 = vmatprep.subr.mxu0 0.0
  %433 = vmatpush1.msra.mxu0 %v351
  %434 = vmatprep.subr.mxu0 0.0
  %435 = vmatpush1.msra.mxu0 %v352
  %436 = vmatprep.subr.mxu0 0.0
  %437 = vmatpush1.msra.mxu0 %v353
  %438 = vmatprep.subr.mxu0 0.0
  %439 = vmatpush1.msra.mxu0 %v354
  %440 = vmatprep.subr.mxu0 0.0
  %441 = vmatpush1.msra.mxu0 %v355
  %442 = vmatprep.subr.mxu0 0.0
  %443 = vmatpush1.msra.mxu0 %v356
  %444 = vmatprep.subr.mxu0 0.0
  %445 = vmatpush1.msra.mxu0 %v357
  %446 = vmatprep.subr.mxu0 0.0
  %447 = vmatpush1.msra.mxu0 0.0
  %448 = vmatprep.subr.mxu0 0.0
  %449 = vmatpush1.msra.mxu0 0.0
  %450 = vmatprep.subr.mxu0 0.0
  %451 = vmatpush1.msra.mxu0 0.0
  %452 = vmatprep.subr.mxu0 0.0
  %453 = vmatpush1.msra.mxu0 0.0
  %454 = vmatprep.subr.mxu0 0.0
  %455 = vmatpush1.msra.mxu0 0.0
  %456 = vmatprep.subr.mxu0 0.0
  %457 = vmatpush1.msra.mxu0 0.0
  %458 = vmatprep.subr.mxu0 0.0
  %459 = vmatpush1.msra.mxu0 0.0
  %460 = vmatprep.subr.mxu0 0.0
  %461 = vmatpush1.msra.mxu0 0.0
  %462 = vmatprep.subr.mxu0 0.0
  %463 = vmatpush1.msra.mxu0 0.0
  %464 = vmatprep.subr.mxu0 0.0
  %465 = vmatpush1.msra.mxu0 0.0
  %466 = vmatprep.subr.mxu0 0.0
  %467 = vmatpush1.msra.mxu0 0.0
  %468 = vmatprep.subr.mxu0 0.0
  %469 = vmatpush1.msra.mxu0 0.0
  %470 = vmatprep.subr.mxu0 0.0
  %471 = vmatpush1.msra.mxu0 0.0
  %472 = vmatprep.subr.mxu0 0.0
  %473 = vmatpush1.msra.mxu0 0.0
  %474 = vmatprep.subr.mxu0 0.0
  %475 = vmatpush1.msra.mxu0 0.0
  %476 = vmatprep.subr.mxu0 0.0
  %477 = vmatpush1.msra.mxu0 0.0
  %478 = vmatprep.mubr.f32.mxu0 0.0
  %479 = vmatmul.mubr.f32.gmra.mrb[0].mxu0 %v358
  %v480 = vpop.f32.mrb[0].mxu0
  %v481 = vadd.f32 %v377, %v480
  %v482 = vpop.f32.mrb[0].mxu0
  %483 = vmatprep.mubr.f32.mxu0 0.0
  %484 = vmatmul.mubr.f32.gmra.mrb[0].mxu0 %v359
  %v485 = vpop.f32.mrb[0].mxu0
  %v486 = vadd.f32 %v382, %v485
  %v487 = vpop.f32.mrb[0].mxu0
  %488 = vmatprep.mubr.f32.mxu0 0.0
  %489 = vmatmul.mubr.f32.gmra.mrb[0].mxu0 %v360
  %v490 = vpop.f32.mrb[0].mxu0
  %v491 = vadd.f32 %v387, %v490
  %v492 = vpop.f32.mrb[0].mxu0
  %493 = vmatprep.mubr.f32.mxu0 0.0
  %494 = vmatmul.mubr.f32.gmra.mrb[0].mxu0 %v361
  %v495 = vpop.f32.mrb[0].mxu0
  %v496 = vadd.f32 %v392, %v495
  %v497 = vpop.f32.mrb[0].mxu0
  %498 = vmatprep.mubr.f32.mxu0 0.0
  %499 = vmatmul.mubr.f32.gmra.mrb[0].mxu0 %v362
  %v500 = vpop.f32.mrb[0].mxu0
  %v501 = vadd.f32 %v397, %v500
  %v502 = vpop.f32.mrb[0].mxu0
  %503 = vmatprep.mubr.f32.mxu0 0.0
  %504 = vmatmul.mubr.f32.gmra.mrb[0].mxu0 %v363
  %v505 = vpop.f32.mrb[0].mxu0
  %v506 = vadd.f32 %v402, %v505
  %v507 = vpop.f32.mrb[0].mxu0
  %508 = vmatprep.mubr.f32.mxu0 0.0
  %509 = vmatmul.mubr.f32.gmra.mrb[0].mxu0 %v364
  %v510 = vpop.f32.mrb[0].mxu0
  %v511 = vadd.f32 %v407, %v510
  %v512 = vpop.f32.mrb[0].mxu0
  %513 = vmatprep.mubr.f32.mxu0 0.0
  %514 = vmatmul.mubr.f32.gmra.mrb[0].mxu0 %v365
  %v515 = vpop.f32.mrb[0].mxu0
  %v516 = vadd.f32 %v412, %v515
  %v517 = vpop.f32.mrb[0].mxu0
  %518 = vdwg.mxu0
  %v519 = vmax.f32 %v481, 0.0
  %v520 = vmax.f32 %v486, 0.0
  %v521 = vmax.f32 %v491, 0.0
  %v522 = vmax.f32 %v496, 0.0
  %v523 = vmax.f32 %v501, 0.0
  %v524 = vmax.f32 %v506, 0.0
  %v525 = vmax.f32 %v511, 0.0
  %v526 = vmax.f32 %v516, 0.0
  %v527 = vld [vmem:[%s5] sm:$0xff]
  %v528 = vld [vmem:[%s5 + $0x8] sm:$0xff]
  %v529 = vld [vmem:[%s5 + $0x10] sm:$0xff]
  %v530 = vld [vmem:[%s5 + $0x18] sm:$0xff]
  %v531 = vld [vmem:[%s6] sm:$0xff]
  %v532 = vld [vmem:[%s6 + $0x8] sm:$0xff]
  %v533 = vld [vmem:[%s6 + $0x10] sm:$0xff]
  %v534 = vld [vmem:[%s6 + $0x18] sm:$0xff]
  %536 = vset.pattern.permute.xlu0 0
  %537 = vperm.xlu0 %536, %v531
  %v538 = vpop.permute.xlu0 %537
  %541 = vset.pattern.permute.xlu0 0
  %542 = vperm.xlu0 %541, %v532
  %v543 = vpop.permute.xlu0 %542
  %546 = vset.pattern.permute.xlu0 0
  %547 = vperm.xlu0 %546, %v533
  %v548 = vpop.permute.xlu0 %547
  %551 = vset.pattern.permute.xlu0 0
  %552 = vperm.xlu0 %551, %v534
  %v553 = vpop.permute.xlu0 %552
  %vm555 = vcmask 523264
  %v557 = vsel %vm555, %v527, 0
  %v560 = vsel %vm555, %v528, 0
  %v563 = vsel %vm555, %v529, 0
  %v566 = vsel %vm555, %v530, 0
  %568 = vmatprep.subr.mxu0 0.0
  %569 = vmatpush1.msra.mxu0 %v519
  %570 = vmatprep.subr.mxu0 0.0
  %571 = vmatpush1.msra.mxu0 %v520
  %572 = vmatprep.subr.mxu0 0.0
  %573 = vmatpush1.msra.mxu0 %v521
  %574 = vmatprep.subr.mxu0 0.0
  %575 = vmatpush1.msra.mxu0 %v522
  %576 = vmatprep.subr.mxu0 0.0
  %577 = vmatpush1.msra.mxu0 %v523
  %578 = vmatprep.subr.mxu0 0.0
  %579 = vmatpush1.msra.mxu0 %v524
  %580 = vmatprep.subr.mxu0 0.0
  %581 = vmatpush1.msra.mxu0 %v525
  %582 = vmatprep.subr.mxu0 0.0
  %583 = vmatpush1.msra.mxu0 %v526
  %584 = vmatprep.subr.mxu0 0.0
  %585 = vmatpush1.msra.mxu0 0.0
  %586 = vmatprep.subr.mxu0 0.0
  %587 = vmatpush1.msra.mxu0 0.0
  %588 = vmatprep.subr.mxu0 0.0
  %589 = vmatpush1.msra.mxu0 0.0
  %590 = vmatprep.subr.mxu0 0.0
  %591 = vmatpush1.msra.mxu0 0.0
  %592 = vmatprep.subr.mxu0 0.0
  %593 = vmatpush1.msra.mxu0 0.0
  %594 = vmatprep.subr.mxu0 0.0
  %595 = vmatpush1.msra.mxu0 0.0
  %596 = vmatprep.subr.mxu0 0.0
  %597 = vmatpush1.msra.mxu0 0.0
  %598 = vmatprep.subr.mxu0 0.0
  %599 = vmatpush1.msra.mxu0 0.0
  %600 = vmatprep.subr.mxu0 0.0
  %601 = vmatpush1.msra.mxu0 0.0
  %602 = vmatprep.subr.mxu0 0.0
  %603 = vmatpush1.msra.mxu0 0.0
  %604 = vmatprep.subr.mxu0 0.0
  %605 = vmatpush1.msra.mxu0 0.0
  %606 = vmatprep.subr.mxu0 0.0
  %607 = vmatpush1.msra.mxu0 0.0
  %608 = vmatprep.subr.mxu0 0.0
  %609 = vmatpush1.msra.mxu0 0.0
  %610 = vmatprep.subr.mxu0 0.0
  %611 = vmatpush1.msra.mxu0 0.0
  %612 = vmatprep.subr.mxu0 0.0
  %613 = vmatpush1.msra.mxu0 0.0
  %614 = vmatprep.subr.mxu0 0.0
  %615 = vmatpush1.msra.mxu0 0.0
  %616 = vmatprep.subr.mxu0 0.0
  %617 = vmatpush1.msra.mxu0 0.0
  %618 = vmatprep.subr.mxu0 0.0
  %619 = vmatpush1.msra.mxu0 0.0
  %620 = vmatprep.subr.mxu0 0.0
  %621 = vmatpush1.msra.mxu0 0.0
  %622 = vmatprep.subr.mxu0 0.0
  %623 = vmatpush1.msra.mxu0 0.0
  %624 = vmatprep.subr.mxu0 0.0
  %625 = vmatpush1.msra.mxu0 0.0
  %626 = vmatprep.subr.mxu0 0.0
  %627 = vmatpush1.msra.mxu0 0.0
  %628 = vmatprep.subr.mxu0 0.0
  %629 = vmatpush1.msra.mxu0 0.0
  %630 = vmatprep.subr.mxu0 0.0
  %631 = vmatpush1.msra.mxu0 0.0
  %632 = vmatprep.mubr.f32.mxu0 0.0
  %633 = vmatmul.mubr.f32.gmra.mrb[0].mxu0 %v557
  %v634 = vpop.f32.mrb[0].mxu0
  %v635 = vadd.f32 %v538, %v634
  %v636 = vpop.f32.mrb[0].mxu0
  %637 = vmatprep.mubr.f32.mxu0 0.0
  %638 = vmatmul.mubr.f32.gmra.mrb[0].mxu0 %v560
  %v639 = vpop.f32.mrb[0].mxu0
  %v640 = vadd.f32 %v543, %v639
  %v641 = vpop.f32.mrb[0].mxu0
  %642 = vmatprep.mubr.f32.mxu0 0.0
  %643 = vmatmul.mubr.f32.gmra.mrb[0].mxu0 %v563
  %v644 = vpop.f32.mrb[0].mxu0
  %v645 = vadd.f32 %v548, %v644
  %v646 = vpop.f32.mrb[0].mxu0
  %647 = vmatprep.mubr.f32.mxu0 0.0
  %648 = vmatmul.mubr.f32.gmra.mrb[0].mxu0 %v566
  %v649 = vpop.f32.mrb[0].mxu0
  %v650 = vadd.f32 %v553, %v649
  %v651 = vpop.f32.mrb[0].mxu0
  %652 = vdwg.mxu0
  %v653 = vmax.f32 %v635, 0.0
  %v654 = vmax.f32 %v640, 0.0
  %v655 = vmax.f32 %v645, 0.0
  %v656 = vmax.f32 %v650, 0.0
  %v657 = vld [vmem:[%s7] sm:$0x1]
  %v658 = vld [vmem:[#allocation2] sm:$0x1]
  %660 = vset.pattern.permute.xlu0 0
  %661 = vperm.xlu0 %660, %v658
  %v662 = vpop.permute.xlu0 %661
  %v664 = vlaneseq
  %v665 = vshrl.u32 %v664, 7
  %v666 = vsub.s32 0, %v665
  %v667 = vrot.slane %v662, %v666
  %vm668 = vcmask 261120
  %v670 = vsel %vm668, %v657, 0
  %672 = vmatprep.subr.mxu0 0.0
  %673 = vmatpush1.msra.mxu0 %v653
  %674 = vmatprep.subr.mxu0 0.0
  %675 = vmatpush1.msra.mxu0 %v654
  %676 = vmatprep.subr.mxu0 0.0
  %677 = vmatpush1.msra.mxu0 %v655
  %678 = vmatprep.subr.mxu0 0.0
  %679 = vmatpush1.msra.mxu0 %v656
  %680 = vmatprep.subr.mxu0 0.0
  %681 = vmatpush1.msra.mxu0 0.0
  %682 = vmatprep.subr.mxu0 0.0
  %683 = vmatpush1.msra.mxu0 0.0
  %684 = vmatprep.subr.mxu0 0.0
  %685 = vmatpush1.msra.mxu0 0.0
  %686 = vmatprep.subr.mxu0 0.0
  %687 = vmatpush1.msra.mxu0 0.0
  %688 = vmatprep.subr.mxu0 0.0
  %689 = vmatpush1.msra.mxu0 0.0
  %690 = vmatprep.subr.mxu0 0.0
  %691 = vmatpush1.msra.mxu0 0.0
  %692 = vmatprep.subr.mxu0 0.0
  %693 = vmatpush1.msra.mxu0 0.0
  %694 = vmatprep.subr.mxu0 0.0
  %695 = vmatpush1.msra.mxu0 0.0
  %696 = vmatprep.subr.mxu0 0.0
  %697 = vmatpush1.msra.mxu0 0.0
  %698 = vmatprep.subr.mxu0 0.0
  %699 = vmatpush1.msra.mxu0 0.0
  %700 = vmatprep.subr.mxu0 0.0
  %701 = vmatpush1.msra.mxu0 0.0
  %702 = vmatprep.subr.mxu0 0.0
  %703 = vmatpush1.msra.mxu0 0.0
  %704 = vmatprep.subr.mxu0 0.0
  %705 = vmatpush1.msra.mxu0 0.0
  %706 = vmatprep.subr.mxu0 0.0
  %707 = vmatpush1.msra.mxu0 0.0
  %708 = vmatprep.subr.mxu0 0.0
  %709 = vmatpush1.msra.mxu0 0.0
  %710 = vmatprep.subr.mxu0 0.0
  %711 = vmatpush1.msra.mxu0 0.0
  %712 = vmatprep.subr.mxu0 0.0
  %713 = vmatpush1.msra.mxu0 0.0
  %714 = vmatprep.subr.mxu0 0.0
  %715 = vmatpush1.msra.mxu0 0.0
  %716 = vmatprep.subr.mxu0 0.0
  %717 = vmatpush1.msra.mxu0 0.0
  %718 = vmatprep.subr.mxu0 0.0
  %719 = vmatpush1.msra.mxu0 0.0
  %720 = vmatprep.subr.mxu0 0.0
  %721 = vmatpush1.msra.mxu0 0.0
  %722 = vmatprep.subr.mxu0 0.0
  %723 = vmatpush1.msra.mxu0 0.0
  %724 = vmatprep.subr.mxu0 0.0
  %725 = vmatpush1.msra.mxu0 0.0
  %726 = vmatprep.subr.mxu0 0.0
  %727 = vmatpush1.msra.mxu0 0.0
  %728 = vmatprep.subr.mxu0 0.0
  %729 = vmatpush1.msra.mxu0 0.0
  %730 = vmatprep.subr.mxu0 0.0
  %731 = vmatpush1.msra.mxu0 0.0
  %732 = vmatprep.subr.mxu0 0.0
  %733 = vmatpush1.msra.mxu0 0.0
  %734 = vmatprep.subr.mxu0 0.0
  %735 = vmatpush1.msra.mxu0 0.0
  %736 = vmatprep.mubr.f32.mxu0 0.0
  %737 = vmatmul.mubr.f32.gmra.mrb[0].mxu0 %v670
  %v738 = vpop.f32.mrb[0].mxu0
  %v739 = vadd.f32 %v667, %v738
  %v740 = vpop.f32.mrb[0].mxu0
  %741 = vdwg.mxu0
  %v742 = vlaneseq
  %vm743 = vcmp.ge.s32.totalorder %v742, 0
  %vm744 = vcmp.lt.s32.totalorder %v742, 128
  %vm745 = vmand %vm743, %vm744
  %746 = vst.msk [vmem:[%s9] sm:$0x1] %vm745, %v739
  %s747 = scalar_lea.vmem %s0, 8
  %v748 = vld [vmem:[%s747] sm:$0xff]
  %v749 = vld [vmem:[%s747 + $0x10] sm:$0xff]
  %v750 = vld [vmem:[%s1] sm:$0xff]
  %v751 = vld [vmem:[%s1 + $0x8] sm:$0xff]
  %v752 = vld [vmem:[%s1 + $0x10] sm:$0xff]
  %v753 = vld [vmem:[%s1 + $0x18] sm:$0xff]
  %v754 = vld [vmem:[%s1 + $0x20] sm:$0xff]
  %v755 = vld [vmem:[%s1 + $0x28] sm:$0xff]
  %v756 = vld [vmem:[%s1 + $0x30] sm:$0xff]
  %v757 = vld [vmem:[%s1 + $0x38] sm:$0xff]
  %v758 = vld [vmem:[%s1 + $0x40] sm:$0xff]
  %v759 = vld [vmem:[%s1 + $0x48] sm:$0xff]
  %v760 = vld [vmem:[%s1 + $0x50] sm:$0xff]
  %v761 = vld [vmem:[%s1 + $0x58] sm:$0xff]
  %v762 = vld [vmem:[%s1 + $0x60] sm:$0xff]
  %v763 = vld [vmem:[%s1 + $0x68] sm:$0xff]
  %v764 = vld [vmem:[%s1 + $0x70] sm:$0xff]
  %v765 = vld [vmem:[%s1 + $0x78] sm:$0xff]
  %v766 = vld [vmem:[%s2] sm:$0xff]
  %v767 = vld [vmem:[%s2 + $0x8] sm:$0xff]
  %v768 = vld [vmem:[%s2 + $0x10] sm:$0xff]
  %v769 = vld [vmem:[%s2 + $0x18] sm:$0xff]
  %v770 = vld [vmem:[%s2 + $0x20] sm:$0xff]
  %v771 = vld [vmem:[%s2 + $0x28] sm:$0xff]
  %v772 = vld [vmem:[%s2 + $0x30] sm:$0xff]
  %v773 = vld [vmem:[%s2 + $0x38] sm:$0xff]
  %v774 = vld [vmem:[%s2 + $0x40] sm:$0xff]
  %v775 = vld [vmem:[%s2 + $0x48] sm:$0xff]
  %v776 = vld [vmem:[%s2 + $0x50] sm:$0xff]
  %v777 = vld [vmem:[%s2 + $0x58] sm:$0xff]
  %v778 = vld [vmem:[%s2 + $0x60] sm:$0xff]
  %v779 = vld [vmem:[%s2 + $0x68] sm:$0xff]
  %v780 = vld [vmem:[%s2 + $0x70] sm:$0xff]
  %v781 = vld [vmem:[%s2 + $0x78] sm:$0xff]
  %783 = vset.pattern.permute.xlu0 0
  %784 = vperm.xlu0 %783, %v766
  %v785 = vpop.permute.xlu0 %784
  %788 = vset.pattern.permute.xlu0 0
  %789 = vperm.xlu0 %788, %v767
  %v790 = vpop.permute.xlu0 %789
  %793 = vset.pattern.permute.xlu0 0
  %794 = vperm.xlu0 %793, %v768
  %v795 = vpop.permute.xlu0 %794
  %798 = vset.pattern.permute.xlu0 0
  %799 = vperm.xlu0 %798, %v769
  %v800 = vpop.permute.xlu0 %799
  %803 = vset.pattern.permute.xlu0 0
  %804 = vperm.xlu0 %803, %v770
  %v805 = vpop.permute.xlu0 %804
  %808 = vset.pattern.permute.xlu0 0
  %809 = vperm.xlu0 %808, %v771
  %v810 = vpop.permute.xlu0 %809
  %813 = vset.pattern.permute.xlu0 0
  %814 = vperm.xlu0 %813, %v772
  %v815 = vpop.permute.xlu0 %814
  %818 = vset.pattern.permute.xlu0 0
  %819 = vperm.xlu0 %818, %v773
  %v820 = vpop.permute.xlu0 %819
  %823 = vset.pattern.permute.xlu0 0
  %824 = vperm.xlu0 %823, %v774
  %v825 = vpop.permute.xlu0 %824
  %828 = vset.pattern.permute.xlu0 0
  %829 = vperm.xlu0 %828, %v775
  %v830 = vpop.permute.xlu0 %829
  %833 = vset.pattern.permute.xlu0 0
  %834 = vperm.xlu0 %833, %v776
  %v835 = vpop.permute.xlu0 %834
  %838 = vset.pattern.permute.xlu0 0
  %839 = vperm.xlu0 %838, %v777
  %v840 = vpop.permute.xlu0 %839
  %843 = vset.pattern.permute.xlu0 0
  %844 = vperm.xlu0 %843, %v778
  %v845 = vpop.permute.xlu0 %844
  %848 = vset.pattern.permute.xlu0 0
  %849 = vperm.xlu0 %848, %v779
  %v850 = vpop.permute.xlu0 %849
  %853 = vset.pattern.permute.xlu0 0
  %854 = vperm.xlu0 %853, %v780
  %v855 = vpop.permute.xlu0 %854
  %858 = vset.pattern.permute.xlu0 0
  %859 = vperm.xlu0 %858, %v781
  %v860 = vpop.permute.xlu0 %859
  %v863 = vsel %vm148, %v750, 0
  %v866 = vsel %vm148, %v751, 0
  %v869 = vsel %vm148, %v752, 0
  %v872 = vsel %vm148, %v753, 0
  %v875 = vsel %vm148, %v754, 0
  %v878 = vsel %vm148, %v755, 0
  %v881 = vsel %vm148, %v756, 0
  %v884 = vsel %vm148, %v757, 0
  %v887 = vsel %vm148, %v758, 0
  %v890 = vsel %vm148, %v759, 0
  %v893 = vsel %vm148, %v760, 0
  %v896 = vsel %vm148, %v761, 0
  %v899 = vsel %vm148, %v762, 0
  %v902 = vsel %vm148, %v763, 0
  %v905 = vsel %vm148, %v764, 0
  %v908 = vsel %vm148, %v765, 0
  %910 = vmatprep.subr.mxu0 0.0
  %911 = vmatpush1.msra.mxu0 %v748
  %912 = vmatprep.subr.mxu0 0.0
  %913 = vmatpush1.msra.mxu0 %v749
  %914 = vmatprep.subr.mxu0 0.0
  %915 = vmatpush1.msra.mxu0 0.0
  %916 = vmatprep.subr.mxu0 0.0
  %917 = vmatpush1.msra.mxu0 0.0
  %918 = vmatprep.subr.mxu0 0.0
  %919 = vmatpush1.msra.mxu0 0.0
  %920 = vmatprep.subr.mxu0 0.0
  %921 = vmatpush1.msra.mxu0 0.0
  %922 = vmatprep.subr.mxu0 0.0
  %923 = vmatpush1.msra.mxu0 0.0
  %924 = vmatprep.subr.mxu0 0.0
  %925 = vmatpush1.msra.mxu0 0.0
  %926 = vmatprep.subr.mxu0 0.0
  %927 = vmatpush1.msra.mxu0 0.0
  %928 = vmatprep.subr.mxu0 0.0
  %929 = vmatpush1.msra.mxu0 0.0
  %930 = vmatprep.subr.mxu0 0.0
  %931 = vmatpush1.msra.mxu0 0.0
  %932 = vmatprep.subr.mxu0 0.0
  %933 = vmatpush1.msra.mxu0 0.0
  %934 = vmatprep.subr.mxu0 0.0
  %935 = vmatpush1.msra.mxu0 0.0
  %936 = vmatprep.subr.mxu0 0.0
  %937 = vmatpush1.msra.mxu0 0.0
  %938 = vmatprep.subr.mxu0 0.0
  %939 = vmatpush1.msra.mxu0 0.0
  %940 = vmatprep.subr.mxu0 0.0
  %941 = vmatpush1.msra.mxu0 0.0
  %942 = vmatprep.subr.mxu0 0.0
  %943 = vmatpush1.msra.mxu0 0.0
  %944 = vmatprep.subr.mxu0 0.0
  %945 = vmatpush1.msra.mxu0 0.0
  %946 = vmatprep.subr.mxu0 0.0
  %947 = vmatpush1.msra.mxu0 0.0
  %948 = vmatprep.subr.mxu0 0.0
  %949 = vmatpush1.msra.mxu0 0.0
  %950 = vmatprep.subr.mxu0 0.0
  %951 = vmatpush1.msra.mxu0 0.0
  %952 = vmatprep.subr.mxu0 0.0
  %953 = vmatpush1.msra.mxu0 0.0
  %954 = vmatprep.subr.mxu0 0.0
  %955 = vmatpush1.msra.mxu0 0.0
  %956 = vmatprep.subr.mxu0 0.0
  %957 = vmatpush1.msra.mxu0 0.0
  %958 = vmatprep.subr.mxu0 0.0
  %959 = vmatpush1.msra.mxu0 0.0
  %960 = vmatprep.subr.mxu0 0.0
  %961 = vmatpush1.msra.mxu0 0.0
  %962 = vmatprep.subr.mxu0 0.0
  %963 = vmatpush1.msra.mxu0 0.0
  %964 = vmatprep.subr.mxu0 0.0
  %965 = vmatpush1.msra.mxu0 0.0
  %966 = vmatprep.subr.mxu0 0.0
  %967 = vmatpush1.msra.mxu0 0.0
  %968 = vmatprep.subr.mxu0 0.0
  %969 = vmatpush1.msra.mxu0 0.0
  %970 = vmatprep.subr.mxu0 0.0
  %971 = vmatpush1.msra.mxu0 0.0
  %972 = vmatprep.subr.mxu0 0.0
  %973 = vmatpush1.msra.mxu0 0.0
  %974 = vmatprep.mubr.f32.mxu0 0.0
  %975 = vmatmul.mubr.f32.gmra.mrb[0].mxu0 %v863
  %v976 = vpop.f32.mrb[0].mxu0
  %v977 = vadd.f32 %v785, %v976
  %v978 = vpop.f32.mrb[0].mxu0
  %979 = vmatprep.mubr.f32.mxu0 0.0
  %980 = vmatmul.mubr.f32.gmra.mrb[0].mxu0 %v866
  %v981 = vpop.f32.mrb[0].mxu0
  %v982 = vadd.f32 %v790, %v981
  %v983 = vpop.f32.mrb[0].mxu0
  %984 = vmatprep.mubr.f32.mxu0 0.0
  %985 = vmatmul.mubr.f32.gmra.mrb[0].mxu0 %v869
  %v986 = vpop.f32.mrb[0].mxu0
  %v987 = vadd.f32 %v795, %v986
  %v988 = vpop.f32.mrb[0].mxu0
  %989 = vmatprep.mubr.f32.mxu0 0.0
  %990 = vmatmul.mubr.f32.gmra.mrb[0].mxu0 %v872
  %v991 = vpop.f32.mrb[0].mxu0
  %v992 = vadd.f32 %v800, %v991
  %v993 = vpop.f32.mrb[0].mxu0
  %994 = vmatprep.mubr.f32.mxu0 0.0
  %995 = vmatmul.mubr.f32.gmra.mrb[0].mxu0 %v875
  %v996 = vpop.f32.mrb[0].mxu0
  %v997 = vadd.f32 %v805, %v996
  %v998 = vpop.f32.mrb[0].mxu0
  %999 = vmatprep.mubr.f32.mxu0 0.0
  %1000 = vmatmul.mubr.f32.gmra.mrb[0].mxu0 %v878
  %v1001 = vpop.f32.mrb[0].mxu0
  %v1002 = vadd.f32 %v810, %v1001
  %v1003 = vpop.f32.mrb[0].mxu0
  %1004 = vmatprep.mubr.f32.mxu0 0.0
  %1005 = vmatmul.mubr.f32.gmra.mrb[0].mxu0 %v881
  %v1006 = vpop.f32.mrb[0].mxu0
  %v1007 = vadd.f32 %v815, %v1006
  %v1008 = vpop.f32.mrb[0].mxu0
  %1009 = vmatprep.mubr.f32.mxu0 0.0
  %1010 = vmatmul.mubr.f32.gmra.mrb[0].mxu0 %v884
  %v1011 = vpop.f32.mrb[0].mxu0
  %v1012 = vadd.f32 %v820, %v1011
  %v1013 = vpop.f32.mrb[0].mxu0
  %1014 = vmatprep.mubr.f32.mxu0 0.0
  %1015 = vmatmul.mubr.f32.gmra.mrb[0].mxu0 %v887
  %v1016 = vpop.f32.mrb[0].mxu0
  %v1017 = vadd.f32 %v825, %v1016
  %v1018 = vpop.f32.mrb[0].mxu0
  %1019 = vmatprep.mubr.f32.mxu0 0.0
  %1020 = vmatmul.mubr.f32.gmra.mrb[0].mxu0 %v890
  %v1021 = vpop.f32.mrb[0].mxu0
  %v1022 = vadd.f32 %v830, %v1021
  %v1023 = vpop.f32.mrb[0].mxu0
  %1024 = vmatprep.mubr.f32.mxu0 0.0
  %1025 = vmatmul.mubr.f32.gmra.mrb[0].mxu0 %v893
  %v1026 = vpop.f32.mrb[0].mxu0
  %v1027 = vadd.f32 %v835, %v1026
  %v1028 = vpop.f32.mrb[0].mxu0
  %1029 = vmatprep.mubr.f32.mxu0 0.0
  %1030 = vmatmul.mubr.f32.gmra.mrb[0].mxu0 %v896
  %v1031 = vpop.f32.mrb[0].mxu0
  %v1032 = vadd.f32 %v840, %v1031
  %v1033 = vpop.f32.mrb[0].mxu0
  %1034 = vmatprep.mubr.f32.mxu0 0.0
  %1035 = vmatmul.mubr.f32.gmra.mrb[0].mxu0 %v899
  %v1036 = vpop.f32.mrb[0].mxu0
  %v1037 = vadd.f32 %v845, %v1036
  %v1038 = vpop.f32.mrb[0].mxu0
  %1039 = vmatprep.mubr.f32.mxu0 0.0
  %1040 = vmatmul.mubr.f32.gmra.mrb[0].mxu0 %v902
  %v1041 = vpop.f32.mrb[0].mxu0
  %v1042 = vadd.f32 %v850, %v1041
  %v1043 = vpop.f32.mrb[0].mxu0
  %1044 = vmatprep.mubr.f32.mxu0 0.0
  %1045 = vmatmul.mubr.f32.gmra.mrb[0].mxu0 %v905
  %v1046 = vpop.f32.mrb[0].mxu0
  %v1047 = vadd.f32 %v855, %v1046
  %v1048 = vpop.f32.mrb[0].mxu0
  %1049 = vmatprep.mubr.f32.mxu0 0.0
  %1050 = vmatmul.mubr.f32.gmra.mrb[0].mxu0 %v908
  %v1051 = vpop.f32.mrb[0].mxu0
  %v1052 = vadd.f32 %v860, %v1051
  %v1053 = vpop.f32.mrb[0].mxu0
  %1054 = vdwg.mxu0
  %v1055 = vmax.f32 %v977, 0.0
  %v1056 = vmax.f32 %v982, 0.0
  %v1057 = vmax.f32 %v987, 0.0
  %v1058 = vmax.f32 %v992, 0.0
  %v1059 = vmax.f32 %v997, 0.0
  %v1060 = vmax.f32 %v1002, 0.0
  %v1061 = vmax.f32 %v1007, 0.0
  %v1062 = vmax.f32 %v1012, 0.0
  %v1063 = vmax.f32 %v1017, 0.0
  %v1064 = vmax.f32 %v1022, 0.0
  %v1065 = vmax.f32 %v1027, 0.0
  %v1066 = vmax.f32 %v1032, 0.0
  %v1067 = vmax.f32 %v1037, 0.0
  %v1068 = vmax.f32 %v1042, 0.0
  %v1069 = vmax.f32 %v1047, 0.0
  %v1070 = vmax.f32 %v1052, 0.0
  %v1071 = vld [vmem:[%s3] sm:$0xff]
  %v1072 = vld [vmem:[%s3 + $0x8] sm:$0xff]
  %v1073 = vld [vmem:[%s3 + $0x10] sm:$0xff]
  %v1074 = vld [vmem:[%s3 + $0x18] sm:$0xff]
  %v1075 = vld [vmem:[%s3 + $0x20] sm:$0xff]
  %v1076 = vld [vmem:[%s3 + $0x28] sm:$0xff]
  %v1077 = vld [vmem:[%s3 + $0x30] sm:$0xff]
  %v1078 = vld [vmem:[%s3 + $0x38] sm:$0xff]
  %v1079 = vld [vmem:[%s4] sm:$0xff]
  %v1080 = vld [vmem:[%s4 + $0x8] sm:$0xff]
  %v1081 = vld [vmem:[%s4 + $0x10] sm:$0xff]
  %v1082 = vld [vmem:[%s4 + $0x18] sm:$0xff]
  %v1083 = vld [vmem:[%s4 + $0x20] sm:$0xff]
  %v1084 = vld [vmem:[%s4 + $0x28] sm:$0xff]
  %v1085 = vld [vmem:[%s4 + $0x30] sm:$0xff]
  %v1086 = vld [vmem:[%s4 + $0x38] sm:$0xff]
  %1088 = vset.pattern.permute.xlu0 0
  %1089 = vperm.xlu0 %1088, %v1079
  %v1090 = vpop.permute.xlu0 %1089
  %1093 = vset.pattern.permute.xlu0 0
  %1094 = vperm.xlu0 %1093, %v1080
  %v1095 = vpop.permute.xlu0 %1094
  %1098 = vset.pattern.permute.xlu0 0
  %1099 = vperm.xlu0 %1098, %v1081
  %v1100 = vpop.permute.xlu0 %1099
  %1103 = vset.pattern.permute.xlu0 0
  %1104 = vperm.xlu0 %1103, %v1082
  %v1105 = vpop.permute.xlu0 %1104
  %1108 = vset.pattern.permute.xlu0 0
  %1109 = vperm.xlu0 %1108, %v1083
  %v1110 = vpop.permute.xlu0 %1109
  %1113 = vset.pattern.permute.xlu0 0
  %1114 = vperm.xlu0 %1113, %v1084
  %v1115 = vpop.permute.xlu0 %1114
  %1118 = vset.pattern.permute.xlu0 0
  %1119 = vperm.xlu0 %1118, %v1085
  %v1120 = vpop.permute.xlu0 %1119
  %1123 = vset.pattern.permute.xlu0 0
  %1124 = vperm.xlu0 %1123, %v1086
  %v1125 = vpop.permute.xlu0 %1124
  %1127 = vmatprep.subr.mxu0 0.0
  %1128 = vmatpush1.msra.mxu0 %v1055
  %1129 = vmatprep.subr.mxu0 0.0
  %1130 = vmatpush1.msra.mxu0 %v1056
  %1131 = vmatprep.subr.mxu0 0.0
  %1132 = vmatpush1.msra.mxu0 %v1057
  %1133 = vmatprep.subr.mxu0 0.0
  %1134 = vmatpush1.msra.mxu0 %v1058
  %1135 = vmatprep.subr.mxu0 0.0
  %1136 = vmatpush1.msra.mxu0 %v1059
  %1137 = vmatprep.subr.mxu0 0.0
  %1138 = vmatpush1.msra.mxu0 %v1060
  %1139 = vmatprep.subr.mxu0 0.0
  %1140 = vmatpush1.msra.mxu0 %v1061
  %1141 = vmatprep.subr.mxu0 0.0
  %1142 = vmatpush1.msra.mxu0 %v1062
  %1143 = vmatprep.subr.mxu0 0.0
  %1144 = vmatpush1.msra.mxu0 %v1063
  %1145 = vmatprep.subr.mxu0 0.0
  %1146 = vmatpush1.msra.mxu0 %v1064
  %1147 = vmatprep.subr.mxu0 0.0
  %1148 = vmatpush1.msra.mxu0 %v1065
  %1149 = vmatprep.subr.mxu0 0.0
  %1150 = vmatpush1.msra.mxu0 %v1066
  %1151 = vmatprep.subr.mxu0 0.0
  %1152 = vmatpush1.msra.mxu0 %v1067
  %1153 = vmatprep.subr.mxu0 0.0
  %1154 = vmatpush1.msra.mxu0 %v1068
  %1155 = vmatprep.subr.mxu0 0.0
  %1156 = vmatpush1.msra.mxu0 %v1069
  %1157 = vmatprep.subr.mxu0 0.0
  %1158 = vmatpush1.msra.mxu0 %v1070
  %1159 = vmatprep.subr.mxu0 0.0
  %1160 = vmatpush1.msra.mxu0 0.0
  %1161 = vmatprep.subr.mxu0 0.0
  %1162 = vmatpush1.msra.mxu0 0.0
  %1163 = vmatprep.subr.mxu0 0.0
  %1164 = vmatpush1.msra.mxu0 0.0
  %1165 = vmatprep.subr.mxu0 0.0
  %1166 = vmatpush1.msra.mxu0 0.0
  %1167 = vmatprep.subr.mxu0 0.0
  %1168 = vmatpush1.msra.mxu0 0.0
  %1169 = vmatprep.subr.mxu0 0.0
  %1170 = vmatpush1.msra.mxu0 0.0
  %1171 = vmatprep.subr.mxu0 0.0
  %1172 = vmatpush1.msra.mxu0 0.0
  %1173 = vmatprep.subr.mxu0 0.0
  %1174 = vmatpush1.msra.mxu0 0.0
  %1175 = vmatprep.subr.mxu0 0.0
  %1176 = vmatpush1.msra.mxu0 0.0
  %1177 = vmatprep.subr.mxu0 0.0
  %1178 = vmatpush1.msra.mxu0 0.0
  %1179 = vmatprep.subr.mxu0 0.0
  %1180 = vmatpush1.msra.mxu0 0.0
  %1181 = vmatprep.subr.mxu0 0.0
  %1182 = vmatpush1.msra.mxu0 0.0
  %1183 = vmatprep.subr.mxu0 0.0
  %1184 = vmatpush1.msra.mxu0 0.0
  %1185 = vmatprep.subr.mxu0 0.0
  %1186 = vmatpush1.msra.mxu0 0.0
  %1187 = vmatprep.subr.mxu0 0.0
  %1188 = vmatpush1.msra.mxu0 0.0
  %1189 = vmatprep.subr.mxu0 0.0
  %1190 = vmatpush1.msra.mxu0 0.0
  %1191 = vmatprep.mubr.f32.mxu0 0.0
  %1192 = vmatmul.mubr.f32.gmra.mrb[0].mxu0 %v1071
  %v1193 = vpop.f32.mrb[0].mxu0
  %v1194 = vadd.f32 %v1090, %v1193
  %v1195 = vpop.f32.mrb[0].mxu0
  %1196 = vmatprep.mubr.f32.mxu0 0.0
  %1197 = vmatmul.mubr.f32.gmra.mrb[0].mxu0 %v1072
  %v1198 = vpop.f32.mrb[0].mxu0
  %v1199 = vadd.f32 %v1095, %v1198
  %v1200 = vpop.f32.mrb[0].mxu0
  %1201 = vmatprep.mubr.f32.mxu0 0.0
  %1202 = vmatmul.mubr.f32.gmra.mrb[0].mxu0 %v1073
  %v1203 = vpop.f32.mrb[0].mxu0
  %v1204 = vadd.f32 %v1100, %v1203
  %v1205 = vpop.f32.mrb[0].mxu0
  %1206 = vmatprep.mubr.f32.mxu0 0.0
  %1207 = vmatmul.mubr.f32.gmra.mrb[0].mxu0 %v1074
  %v1208 = vpop.f32.mrb[0].mxu0
  %v1209 = vadd.f32 %v1105, %v1208
  %v1210 = vpop.f32.mrb[0].mxu0
  %1211 = vmatprep.mubr.f32.mxu0 0.0
  %1212 = vmatmul.mubr.f32.gmra.mrb[0].mxu0 %v1075
  %v1213 = vpop.f32.mrb[0].mxu0
  %v1214 = vadd.f32 %v1110, %v1213
  %v1215 = vpop.f32.mrb[0].mxu0
  %1216 = vmatprep.mubr.f32.mxu0 0.0
  %1217 = vmatmul.mubr.f32.gmra.mrb[0].mxu0 %v1076
  %v1218 = vpop.f32.mrb[0].mxu0
  %v1219 = vadd.f32 %v1115, %v1218
  %v1220 = vpop.f32.mrb[0].mxu0
  %1221 = vmatprep.mubr.f32.mxu0 0.0
  %1222 = vmatmul.mubr.f32.gmra.mrb[0].mxu0 %v1077
  %v1223 = vpop.f32.mrb[0].mxu0
  %v1224 = vadd.f32 %v1120, %v1223
  %v1225 = vpop.f32.mrb[0].mxu0
  %1226 = vmatprep.mubr.f32.mxu0 0.0
  %1227 = vmatmul.mubr.f32.gmra.mrb[0].mxu0 %v1078
  %v1228 = vpop.f32.mrb[0].mxu0
  %v1229 = vadd.f32 %v1125, %v1228
  %v1230 = vpop.f32.mrb[0].mxu0
  %1231 = vdwg.mxu0
  %v1232 = vmax.f32 %v1194, 0.0
  %v1233 = vmax.f32 %v1199, 0.0
  %v1234 = vmax.f32 %v1204, 0.0
  %v1235 = vmax.f32 %v1209, 0.0
  %v1236 = vmax.f32 %v1214, 0.0
  %v1237 = vmax.f32 %v1219, 0.0
  %v1238 = vmax.f32 %v1224, 0.0
  %v1239 = vmax.f32 %v1229, 0.0
  %v1240 = vld [vmem:[%s5] sm:$0xff]
  %v1241 = vld [vmem:[%s5 + $0x8] sm:$0xff]
  %v1242 = vld [vmem:[%s5 + $0x10] sm:$0xff]
  %v1243 = vld [vmem:[%s5 + $0x18] sm:$0xff]
  %v1244 = vld [vmem:[%s6] sm:$0xff]
  %v1245 = vld [vmem:[%s6 + $0x8] sm:$0xff]
  %v1246 = vld [vmem:[%s6 + $0x10] sm:$0xff]
  %v1247 = vld [vmem:[%s6 + $0x18] sm:$0xff]
  %1249 = vset.pattern.permute.xlu0 0
  %1250 = vperm.xlu0 %1249, %v1244
  %v1251 = vpop.permute.xlu0 %1250
  %1254 = vset.pattern.permute.xlu0 0
  %1255 = vperm.xlu0 %1254, %v1245
  %v1256 = vpop.permute.xlu0 %1255
  %1259 = vset.pattern.permute.xlu0 0
  %1260 = vperm.xlu0 %1259, %v1246
  %v1261 = vpop.permute.xlu0 %1260
  %1264 = vset.pattern.permute.xlu0 0
  %1265 = vperm.xlu0 %1264, %v1247
  %v1266 = vpop.permute.xlu0 %1265
  %v1269 = vsel %vm555, %v1240, 0
  %v1272 = vsel %vm555, %v1241, 0
  %v1275 = vsel %vm555, %v1242, 0
  %v1278 = vsel %vm555, %v1243, 0
  %1280 = vmatprep.subr.mxu0 0.0
  %1281 = vmatpush1.msra.mxu0 %v1232
  %1282 = vmatprep.subr.mxu0 0.0
  %1283 = vmatpush1.msra.mxu0 %v1233
  %1284 = vmatprep.subr.mxu0 0.0
  %1285 = vmatpush1.msra.mxu0 %v1234
  %1286 = vmatprep.subr.mxu0 0.0
  %1287 = vmatpush1.msra.mxu0 %v1235
  %1288 = vmatprep.subr.mxu0 0.0
  %1289 = vmatpush1.msra.mxu0 %v1236
  %1290 = vmatprep.subr.mxu0 0.0
  %1291 = vmatpush1.msra.mxu0 %v1237
  %1292 = vmatprep.subr.mxu0 0.0
  %1293 = vmatpush1.msra.mxu0 %v1238
  %1294 = vmatprep.subr.mxu0 0.0
  %1295 = vmatpush1.msra.mxu0 %v1239
  %1296 = vmatprep.subr.mxu0 0.0
  %1297 = vmatpush1.msra.mxu0 0.0
  %1298 = vmatprep.subr.mxu0 0.0
  %1299 = vmatpush1.msra.mxu0 0.0
  %1300 = vmatprep.subr.mxu0 0.0
  %1301 = vmatpush1.msra.mxu0 0.0
  %1302 = vmatprep.subr.mxu0 0.0
  %1303 = vmatpush1.msra.mxu0 0.0
  %1304 = vmatprep.subr.mxu0 0.0
  %1305 = vmatpush1.msra.mxu0 0.0
  %1306 = vmatprep.subr.mxu0 0.0
  %1307 = vmatpush1.msra.mxu0 0.0
  %1308 = vmatprep.subr.mxu0 0.0
  %1309 = vmatpush1.msra.mxu0 0.0
  %1310 = vmatprep.subr.mxu0 0.0
  %1311 = vmatpush1.msra.mxu0 0.0
  %1312 = vmatprep.subr.mxu0 0.0
  %1313 = vmatpush1.msra.mxu0 0.0
  %1314 = vmatprep.subr.mxu0 0.0
  %1315 = vmatpush1.msra.mxu0 0.0
  %1316 = vmatprep.subr.mxu0 0.0
  %1317 = vmatpush1.msra.mxu0 0.0
  %1318 = vmatprep.subr.mxu0 0.0
  %1319 = vmatpush1.msra.mxu0 0.0
  %1320 = vmatprep.subr.mxu0 0.0
  %1321 = vmatpush1.msra.mxu0 0.0
  %1322 = vmatprep.subr.mxu0 0.0
  %1323 = vmatpush1.msra.mxu0 0.0
  %1324 = vmatprep.subr.mxu0 0.0
  %1325 = vmatpush1.msra.mxu0 0.0
  %1326 = vmatprep.subr.mxu0 0.0
  %1327 = vmatpush1.msra.mxu0 0.0
  %1328 = vmatprep.subr.mxu0 0.0
  %1329 = vmatpush1.msra.mxu0 0.0
  %1330 = vmatprep.subr.mxu0 0.0
  %1331 = vmatpush1.msra.mxu0 0.0
  %1332 = vmatprep.subr.mxu0 0.0
  %1333 = vmatpush1.msra.mxu0 0.0
  %1334 = vmatprep.subr.mxu0 0.0
  %1335 = vmatpush1.msra.mxu0 0.0
  %1336 = vmatprep.subr.mxu0 0.0
  %1337 = vmatpush1.msra.mxu0 0.0
  %1338 = vmatprep.subr.mxu0 0.0
  %1339 = vmatpush1.msra.mxu0 0.0
  %1340 = vmatprep.subr.mxu0 0.0
  %1341 = vmatpush1.msra.mxu0 0.0
  %1342 = vmatprep.subr.mxu0 0.0
  %1343 = vmatpush1.msra.mxu0 0.0
  %1344 = vmatprep.mubr.f32.mxu0 0.0
  %1345 = vmatmul.mubr.f32.gmra.mrb[0].mxu0 %v1269
  %v1346 = vpop.f32.mrb[0].mxu0
  %v1347 = vadd.f32 %v1251, %v1346
  %v1348 = vpop.f32.mrb[0].mxu0
  %1349 = vmatprep.mubr.f32.mxu0 0.0
  %1350 = vmatmul.mubr.f32.gmra.mrb[0].mxu0 %v1272
  %v1351 = vpop.f32.mrb[0].mxu0
  %v1352 = vadd.f32 %v1256, %v1351
  %v1353 = vpop.f32.mrb[0].mxu0
  %1354 = vmatprep.mubr.f32.mxu0 0.0
  %1355 = vmatmul.mubr.f32.gmra.mrb[0].mxu0 %v1275
  %v1356 = vpop.f32.mrb[0].mxu0
  %v1357 = vadd.f32 %v1261, %v1356
  %v1358 = vpop.f32.mrb[0].mxu0
  %1359 = vmatprep.mubr.f32.mxu0 0.0
  %1360 = vmatmul.mubr.f32.gmra.mrb[0].mxu0 %v1278
  %v1361 = vpop.f32.mrb[0].mxu0
  %v1362 = vadd.f32 %v1266, %v1361
  %v1363 = vpop.f32.mrb[0].mxu0
  %1364 = vdwg.mxu0
  %v1365 = vmax.f32 %v1347, 0.0
  %v1366 = vmax.f32 %v1352, 0.0
  %v1367 = vmax.f32 %v1357, 0.0
  %v1368 = vmax.f32 %v1362, 0.0
  %v1369 = vld [vmem:[%s7] sm:$0x1]
  %v1370 = vld [vmem:[#allocation2] sm:$0x1]
  %1372 = vset.pattern.permute.xlu0 0
  %1373 = vperm.xlu0 %1372, %v1370
  %v1374 = vpop.permute.xlu0 %1373
  %v1376 = vlaneseq
  %v1377 = vshrl.u32 %v1376, 7
  %v1378 = vsub.s32 0, %v1377
  %v1379 = vrot.slane %v1374, %v1378
  %v1381 = vsel %vm668, %v1369, 0
  %1383 = vmatprep.subr.mxu0 0.0
  %1384 = vmatpush1.msra.mxu0 %v1365
  %1385 = vmatprep.subr.mxu0 0.0
  %1386 = vmatpush1.msra.mxu0 %v1366
  %1387 = vmatprep.subr.mxu0 0.0
  %1388 = vmatpush1.msra.mxu0 %v1367
  %1389 = vmatprep.subr.mxu0 0.0
  %1390 = vmatpush1.msra.mxu0 %v1368
  %1391 = vmatprep.subr.mxu0 0.0
  %1392 = vmatpush1.msra.mxu0 0.0
  %1393 = vmatprep.subr.mxu0 0.0
  %1394 = vmatpush1.msra.mxu0 0.0
  %1395 = vmatprep.subr.mxu0 0.0
  %1396 = vmatpush1.msra.mxu0 0.0
  %1397 = vmatprep.subr.mxu0 0.0
  %1398 = vmatpush1.msra.mxu0 0.0
  %1399 = vmatprep.subr.mxu0 0.0
  %1400 = vmatpush1.msra.mxu0 0.0
  %1401 = vmatprep.subr.mxu0 0.0
  %1402 = vmatpush1.msra.mxu0 0.0
  %1403 = vmatprep.subr.mxu0 0.0
  %1404 = vmatpush1.msra.mxu0 0.0
  %1405 = vmatprep.subr.mxu0 0.0
  %1406 = vmatpush1.msra.mxu0 0.0
  %1407 = vmatprep.subr.mxu0 0.0
  %1408 = vmatpush1.msra.mxu0 0.0
  %1409 = vmatprep.subr.mxu0 0.0
  %1410 = vmatpush1.msra.mxu0 0.0
  %1411 = vmatprep.subr.mxu0 0.0
  %1412 = vmatpush1.msra.mxu0 0.0
  %1413 = vmatprep.subr.mxu0 0.0
  %1414 = vmatpush1.msra.mxu0 0.0
  %1415 = vmatprep.subr.mxu0 0.0
  %1416 = vmatpush1.msra.mxu0 0.0
  %1417 = vmatprep.subr.mxu0 0.0
  %1418 = vmatpush1.msra.mxu0 0.0
  %1419 = vmatprep.subr.mxu0 0.0
  %1420 = vmatpush1.msra.mxu0 0.0
  %1421 = vmatprep.subr.mxu0 0.0
  %1422 = vmatpush1.msra.mxu0 0.0
  %1423 = vmatprep.subr.mxu0 0.0
  %1424 = vmatpush1.msra.mxu0 0.0
  %1425 = vmatprep.subr.mxu0 0.0
  %1426 = vmatpush1.msra.mxu0 0.0
  %1427 = vmatprep.subr.mxu0 0.0
  %1428 = vmatpush1.msra.mxu0 0.0
  %1429 = vmatprep.subr.mxu0 0.0
  %1430 = vmatpush1.msra.mxu0 0.0
  %1431 = vmatprep.subr.mxu0 0.0
  %1432 = vmatpush1.msra.mxu0 0.0
  %1433 = vmatprep.subr.mxu0 0.0
  %1434 = vmatpush1.msra.mxu0 0.0
  %1435 = vmatprep.subr.mxu0 0.0
  %1436 = vmatpush1.msra.mxu0 0.0
  %1437 = vmatprep.subr.mxu0 0.0
  %1438 = vmatpush1.msra.mxu0 0.0
  %1439 = vmatprep.subr.mxu0 0.0
  %1440 = vmatpush1.msra.mxu0 0.0
  %1441 = vmatprep.subr.mxu0 0.0
  %1442 = vmatpush1.msra.mxu0 0.0
  %1443 = vmatprep.subr.mxu0 0.0
  %1444 = vmatpush1.msra.mxu0 0.0
  %1445 = vmatprep.subr.mxu0 0.0
  %1446 = vmatpush1.msra.mxu0 0.0
  %1447 = vmatprep.mubr.f32.mxu0 0.0
  %1448 = vmatmul.mubr.f32.gmra.mrb[0].mxu0 %v1381
  %v1449 = vpop.f32.mrb[0].mxu0
  %v1450 = vadd.f32 %v1379, %v1449
  %v1451 = vpop.f32.mrb[0].mxu0
  %1452 = vdwg.mxu0
  %s1453 = scalar_lea.vmem %s9, 1
  %1454 = vst.msk [vmem:[%s1453] sm:$0x1] %vm745, %v1450
  // Predicated region
  $region38: #{rent_prediction_forward.1} parent=0 // pred_check
    _
  $region39: #{rent_prediction_forward.1} parent=0 // pred_check_branch
    %1456 = sbr.rel (0) target = $region41
  $region40: #{rent_prediction_forward.1} parent=0 // pred_region
    _
  $region41: #{rent_prediction_forward.1} parent=0 // pred_fallthru
    _
  // Predicated region
  $region42: #{rent_prediction_forward.1} parent=0 // pred_check
    _
  $region43: #{rent_prediction_forward.1} parent=0 // pred_check_branch
    %1458 = sbr.rel (0) target = $region45
  $region44: #{rent_prediction_forward.1} parent=0 // pred_region
    _
  $region45: #{rent_prediction_forward.1} parent=0 // pred_fallthru
    _

</llo_original>
